<compile_context>
chip_gen: v5e
topology: v5e:2x2
jax: 0.10.0
libtpu: 0.0.40
codegen_flags: <defaults>
</compile_context>

<pallas_src>
import functools

import jax
import jax.numpy as jnp
from jax import lax
from jax.experimental import pallas as pl
from jax.experimental.pallas import tpu as pltpu


_CMID = 64     # conv1 output channels (fixed by the module)
_CBR = 32      # per-branch channels
_KEFF = 7      # effective (largest) kernel size
_PAD = 3       # halo width


def _ms_block_kernel(x_ref, w1_ref, b1_ref, weff_ref, beff_ref, out_ref,
                     pad_ref, acc_ref, *, H, W):
    """One batch image per grid step; everything stays resident in VMEM."""
    HW = H * W
    C = _CMID
    P = _PAD
    K = _KEFF

    # --- re-zero only the 3-pixel halo strips --------------------------------
    # (the interior [P:H+P, P:W+P] is fully overwritten below; re-zeroing the
    #  halo every step — instead of only at program_id==0 — keeps this correct
    #  when the "parallel" batch axis is sharded across TensorCores, each with
    #  its own private scratch.)
    pad_ref[0:P, :, :] = jnp.zeros((P, W + 2 * P, C), jnp.float32)
    pad_ref[H + P:H + 2 * P, :, :] = jnp.zeros((P, W + 2 * P, C), jnp.float32)
    pad_ref[P:H + P, 0:P, :] = jnp.zeros((H, P, C), jnp.float32)
    pad_ref[P:H + P, W + P:W + 2 * P, :] = jnp.zeros((H, P, C), jnp.float32)

    # --- conv1: 1x1 (Cin -> 64) + ReLU ---------------------------------------
    # Lane-dense orientation: (64, Cin) @ (Cin, H*W) -> (64, H*W), then moved
    # into the NHWC-layout padded scratch used by the spatial taps.
    h = jnp.dot(w1_ref[...], x_ref[0], preferred_element_type=jnp.float32)   # (C, HW)
    x1 = jnp.maximum(h.T + b1_ref[...], 0.0)                                  # (HW, C)
    pad_ref[P:H + P, P:W + P, :] = x1.reshape(H, W, C)

    # --- fused {3x3, 5x5, 7x7 branches + concat + conv3} = effective 7x7 -----
    acc_ref[...] = jnp.broadcast_to(beff_ref[...], (HW, C))    # conv3 bias folded in

    @pl.loop(0, K)
    def _(dy):
        row = jnp.zeros((HW, C), jnp.float32)
        for dx in range(K):                      # 7 unrolled MXU dots per row
            patch = pad_ref[pl.ds(dy, H), dx:dx + W, :].reshape(HW, C)
            row = row + jnp.dot(patch, weff_ref[dy * K + dx],
                                preferred_element_type=jnp.float32)
        acc_ref[...] += row

    # --- final ReLU (conv3 bias already included) -----------------------------
    out_ref[0] = jnp.maximum(acc_ref[...], 0.0)


@jax.jit
def ms_block(x, w1, b1, w2_1, b2_1, w2_2, b2_2, w2_3, b2_3, w3, b3):
    """MSBlock forward. x: (N, Cin, H, W) NCHW; weights in PyTorch layouts."""
    N, Cin, H, W = x.shape
    C, K, P = _CMID, _KEFF, _PAD
    HW = H * W
    hp = lax.Precision.HIGHEST

    # ---- pre-compose the three branch convs with conv3 (all-linear chain) ----
    w3_2d = w3[:, :, 0, 0].astype(jnp.float32)                 # (64, 96) [out, in]

    def compose(w2, w3_slice):
        # w2: (32, 64, k, k) OIHW ; w3_slice: (64, 32) [c_out, c_branch]
        # -> effective taps (k, k, 64_in, 64_out)
        return jnp.einsum("oihw,co->hwic", w2.astype(jnp.float32),
                          w3_slice, precision=hp)

    weff = jnp.zeros((K, K, C, C), jnp.float32)
    weff = weff.at[0:7, 0:7].add(compose(w2_3, w3_2d[:, 2 * _CBR:3 * _CBR]))  # 7x7
    weff = weff.at[1:6, 1:6].add(compose(w2_2, w3_2d[:, 1 * _CBR:2 * _CBR]))  # 5x5
    weff = weff.at[2:5, 2:5].add(compose(w2_1, w3_2d[:, 0 * _CBR:1 * _CBR]))  # 3x3
    weff = weff.reshape(K * K, C, C)

    b2cat = jnp.concatenate([b2_1, b2_2, b2_3]).astype(jnp.float32)           # (96,)
    beff = (b3.astype(jnp.float32)
            + jnp.einsum("cm,m->c", w3_2d, b2cat, precision=hp)).reshape(1, C)

    w1_2d = w1[:, :, 0, 0].astype(jnp.float32)                 # (64, Cin)
    b1_row = b1.reshape(1, C).astype(jnp.float32)
    x_flat = x.reshape(N, Cin, HW).astype(jnp.float32)         # lane-dense input

    kernel = functools.partial(_ms_block_kernel, H=H, W=W)
    out_flat = pl.pallas_call(
        kernel,
        out_shape=jax.ShapeDtypeStruct((N, HW, C), jnp.float32),
        grid_spec=pltpu.PrefetchScalarGridSpec(
            num_scalar_prefetch=0,
            grid=(N,),
            in_specs=[
                pl.BlockSpec((1, Cin, HW), lambda n: (n, 0, 0)),      # x (NCHW-flat)
                pl.BlockSpec((C, Cin), lambda n: (0, 0)),             # conv1 weight
                pl.BlockSpec((1, C), lambda n: (0, 0)),               # conv1 bias
                pl.BlockSpec((K * K, C, C), lambda n: (0, 0, 0)),     # fused 7x7 taps
                pl.BlockSpec((1, C), lambda n: (0, 0)),               # fused bias
            ],
            out_specs=pl.BlockSpec((1, HW, C), lambda n: (n, 0, 0)),
            scratch_shapes=[
                pltpu.VMEM((H + 2 * P, W + 2 * P, C), jnp.float32),   # padded conv1 out
                pltpu.VMEM((HW, C), jnp.float32),                     # tap accumulator
            ],
        ),
        compiler_params=pltpu.CompilerParams(
            dimension_semantics=("parallel",),
            vmem_limit_bytes=32 * 1024 * 1024,
        ),
    )(x_flat, w1_2d, b1_row, weff, beff)

    # (N, H*W, 64) -> (N, 64, H, W)
    return jnp.transpose(out_flat.reshape(N, H, W, C), (0, 3, 1, 2))


def ms_block_ref(x, w1, b1, w2_1, b2_1, w2_2, b2_2, w2_3, b2_3, w3, b3):
    """Pure-JAX/XLA reference mirroring the PyTorch module (correctness check)."""
    hp = lax.Precision.HIGHEST
    dn = ("NCHW", "OIHW", "NCHW")

    def conv(v, w, p):
        return lax.conv_general_dilated(v, w, (1, 1), ((p, p), (p, p)),
                                        dimension_numbers=dn, precision=hp)

    def add_b(v, b):
        return v + b.reshape(1, -1, 1, 1)

    h = jnp.maximum(add_b(conv(x, w1, 0), b1), 0.0)
    y1 = add_b(conv(h, w2_1, 1), b2_1)
    y2 = add_b(conv(h, w2_2, 2), b2_2)
    y3 = add_b(conv(h, w2_3, 3), b2_3)
    ycat = jnp.concatenate([y1, y2, y3], axis=1)
    return jnp.maximum(add_b(conv(ycat, w3, 0), b3), 0.0)


if __name__ == "__main__":
    key = jax.random.PRNGKey(0)
    ks = jax.random.split(key, 11)

    N, Cin, H, W = 2, 4, 16, 16
    x = jax.random.normal(ks[0], (N, Cin, H, W), jnp.float32)
    # Deterministic synthetic parameters (shapes from the module __init__).
    w1 = jax.random.normal(ks[1], (_CMID, Cin, 1, 1), jnp.float32) * 0.2
    b1 = jax.random.normal(ks[2], (_CMID,), jnp.float32) * 0.1
    w2_1 = jax.random.normal(ks[3], (_CBR, _CMID, 3, 3), jnp.float32) * 0.05
    b2_1 = jax.random.normal(ks[4], (_CBR,), jnp.float32) * 0.1
    w2_2 = jax.random.normal(ks[5], (_CBR, _CMID, 5, 5), jnp.float32) * 0.05
    b2_2 = jax.random.normal(ks[6], (_CBR,), jnp.float32) * 0.1
    w2_3 = jax.random.normal(ks[7], (_CBR, _CMID, 7, 7), jnp.float32) * 0.05
    b2_3 = jax.random.normal(ks[8], (_CBR,), jnp.float32) * 0.1
    w3 = jax.random.normal(ks[9], (_CMID, 3 * _CBR, 1, 1), jnp.float32) * 0.1
    b3 = jax.random.normal(ks[10], (_CMID,), jnp.float32) * 0.1

    args = (x, w1, b1, w2_1, b2_1, w2_2, b2_2, w2_3, b2_3, w3, b3)
    out = jax.block_until_ready(ms_block(*args))
    ref = ms_block_ref(*args)

    assert out.shape == (N, _CMID, H, W), out.shape
    max_err = float(jnp.max(jnp.abs(out - ref)))
    assert jnp.allclose(out, ref, atol=2e-3, rtol=2e-3), f"max_err={max_err}"
    print("KERNEL_OK")
</pallas_src>

<mosaic_0001>
module attributes {stable_mosaic.version = 11 : i64} {
  func.func @_ms_block_kernel(%arg0: i32, %arg1: memref<1x4x256xf32, #tpu.memory_space<vmem>>, %arg2: memref<64x4xf32, #tpu.memory_space<vmem>>, %arg3: memref<1x64xf32, #tpu.memory_space<vmem>>, %arg4: memref<49x64x64xf32, #tpu.memory_space<vmem>>, %arg5: memref<1x64xf32, #tpu.memory_space<vmem>>, %arg6: memref<1x256x64xf32, #tpu.memory_space<vmem>>, %arg7: memref<22x22x64xf32, #tpu.memory_space<vmem>>, %arg8: memref<256x64xf32, #tpu.memory_space<vmem>>) attributes {dimension_semantics = [#tpu.dimension_semantics<parallel>], iteration_bounds = array<i64: 2>, scalar_prefetch = 0 : i64, scratch_operands = 2 : i64, tpu.core_type = #tpu.core_type<tc>, window_params = [{transform_indices = @transform_0, window_bounds = array<i64: 1, 4, 256>}, {pipeline_mode = #tpu.pipeline_mode<synchronous>, transform_indices = @transform_1, window_bounds = array<i64: 64, 4>}, {pipeline_mode = #tpu.pipeline_mode<synchronous>, transform_indices = @transform_2, window_bounds = array<i64: 1, 64>}, {pipeline_mode = #tpu.pipeline_mode<synchronous>, transform_indices = @transform_3, window_bounds = array<i64: 49, 64, 64>}, {pipeline_mode = #tpu.pipeline_mode<synchronous>, transform_indices = @transform_4, window_bounds = array<i64: 1, 64>}, {transform_indices = @transform_5, window_bounds = array<i64: 1, 256, 64>}]} {
    %cst = arith.constant 0.000000e+00 : f32
    %0 = vector.broadcast %cst : f32 to vector<3x22x64xf32>
    %c0 = arith.constant 0 : index
    %c0_0 = arith.constant 0 : index
    %c0_1 = arith.constant 0 : index
    %1 = vector.load %arg7[%c0, %c0_0, %c0_1] : memref<22x22x64xf32, #tpu.memory_space<vmem>>, vector<3x22x64xf32>
    tpu.vector_store %arg7[%c0, %c0_0, %c0_1], %0 {strides = array<i32>} : memref<22x22x64xf32, #tpu.memory_space<vmem>>, vector<3x22x64xf32>,
    %cst_2 = arith.constant 0.000000e+00 : f32
    %2 = vector.broadcast %cst_2 : f32 to vector<3x22x64xf32>
    %c19 = arith.constant 19 : index
    %c0_3 = arith.constant 0 : index
    %c0_4 = arith.constant 0 : index
    %3 = vector.load %arg7[%c19, %c0_3, %c0_4] : memref<22x22x64xf32, #tpu.memory_space<vmem>>, vector<3x22x64xf32>
    tpu.vector_store %arg7[%c19, %c0_3, %c0_4], %2 {strides = array<i32>} : memref<22x22x64xf32, #tpu.memory_space<vmem>>, vector<3x22x64xf32>,
    %cst_5 = arith.constant 0.000000e+00 : f32
    %4 = vector.broadcast %cst_5 : f32 to vector<16x3x64xf32>
    %c3 = arith.constant 3 : index
    %c0_6 = arith.constant 0 : index
    %c0_7 = arith.constant 0 : index
    %5 = vector.load %arg7[%c3, %c0_6, %c0_7] : memref<22x22x64xf32, #tpu.memory_space<vmem>>, vector<16x3x64xf32>
    tpu.vector_store %arg7[%c3, %c0_6, %c0_7], %4 {strides = array<i32>} : memref<22x22x64xf32, #tpu.memory_space<vmem>>, vector<16x3x64xf32>,
    %cst_8 = arith.constant 0.000000e+00 : f32
    %6 = vector.broadcast %cst_8 : f32 to vector<16x3x64xf32>
    %c3_9 = arith.constant 3 : index
    %c19_10 = arith.constant 19 : index
    %c0_11 = arith.constant 0 : index
    %7 = vector.load %arg7[%c3_9, %c19_10, %c0_11] : memref<22x22x64xf32, #tpu.memory_space<vmem>>, vector<16x3x64xf32>
    tpu.vector_store %arg7[%c3_9, %c19_10, %c0_11], %6 {strides = array<i32>} : memref<22x22x64xf32, #tpu.memory_space<vmem>>, vector<16x3x64xf32>,
    %c0_12 = arith.constant 0 : index
    %c0_13 = arith.constant 0 : index
    %8 = vector.load %arg2[%c0_12, %c0_13] : memref<64x4xf32, #tpu.memory_space<vmem>>, vector<64x4xf32>
    %c0_14 = arith.constant 0 : index
    %c0_15 = arith.constant 0 : index
    %c0_16 = arith.constant 0 : index
    %9 = vector.load %arg1[%c0_14, %c0_15, %c0_16] : memref<1x4x256xf32, #tpu.memory_space<vmem>>, vector<1x4x256xf32>
    %10 = vector.shape_cast %9 : vector<1x4x256xf32> to vector<4x256xf32>
    %cst_17 = arith.constant dense<0.000000e+00> : vector<64x256xf32>
    %11 = tpu.matmul %8, %10, %cst_17 {dimension_numbers = #tpu.dot_dimension_numbers<[1], [0], [0], [1], [0, 0, 1, 1], [], []>} : vector<64x4xf32>, vector<4x256xf32>, vector<64x256xf32> -> vector<64x256xf32>
    %12 = tpu.transpose %11, [1, 0] : vector<64x256xf32> -> vector<256x64xf32>
    %c0_18 = arith.constant 0 : index
    %c0_19 = arith.constant 0 : index
    %13 = vector.load %arg3[%c0_18, %c0_19] : memref<1x64xf32, #tpu.memory_space<vmem>>, vector<1x64xf32>
    %14 = vector.broadcast %13 : vector<1x64xf32> to vector<256x64xf32>
    %15 = arith.addf %12, %14 : vector<256x64xf32>
    %cst_20 = arith.constant 0.000000e+00 : f32
    %16 = vector.broadcast %cst_20 : f32 to vector<256x64xf32>
    %17 = arith.maximumf %15, %16 : vector<256x64xf32>
    %18 = vector.shape_cast %17 : vector<256x64xf32> to vector<16x16x64xf32>
    %c3_21 = arith.constant 3 : index
    %c3_22 = arith.constant 3 : index
    %c0_23 = arith.constant 0 : index
    %19 = vector.load %arg7[%c3_21, %c3_22, %c0_23] : memref<22x22x64xf32, #tpu.memory_space<vmem>>, vector<16x16x64xf32>
    tpu.vector_store %arg7[%c3_21, %c3_22, %c0_23], %18 {strides = array<i32>} : memref<22x22x64xf32, #tpu.memory_space<vmem>>, vector<16x16x64xf32>,
    %c0_24 = arith.constant 0 : index
    %c0_25 = arith.constant 0 : index
    %20 = vector.load %arg5[%c0_24, %c0_25] : memref<1x64xf32, #tpu.memory_space<vmem>>, vector<1x64xf32>
    %21 = vector.shape_cast %20 : vector<1x64xf32> to vector<1x64xf32>
    %22 = vector.broadcast %21 : vector<1x64xf32> to vector<256x64xf32>
    %c0_26 = arith.constant 0 : index
    %c0_27 = arith.constant 0 : index
    %23 = vector.load %arg8[%c0_26, %c0_27] : memref<256x64xf32, #tpu.memory_space<vmem>>, vector<256x64xf32>
    tpu.vector_store %arg8[%c0_26, %c0_27], %22 {strides = array<i32>} : memref<256x64xf32, #tpu.memory_space<vmem>>, vector<256x64xf32>,
    %c0_i32 = arith.constant 0 : i32
    %c7_i32 = arith.constant 7 : i32
    %24 = arith.addi %c0_i32, %c7_i32 : i32
    %c1_i32 = arith.constant 1 : i32
    scf.for %arg9 = %c0_i32 to %24 step %c1_i32  : i32 {
      %c1_i32_35 = arith.constant 1 : i32
      %31 = arith.muli %arg9, %c1_i32_35 : i32
      %c0_i32_36 = arith.constant 0 : i32
      %32 = arith.addi %c0_i32_36, %31 : i32
      %cst_37 = arith.constant 0.000000e+00 : f32
      %33 = vector.broadcast %cst_37 : f32 to vector<256x64xf32>
      %34 = arith.index_cast %32 : i32 to index
      %c0_38 = arith.constant 0 : index
      %c0_39 = arith.constant 0 : index
      %35 = vector.load %arg7[%34, %c0_38, %c0_39] : memref<22x22x64xf32, #tpu.memory_space<vmem>>, vector<16x16x64xf32>
      %36 = vector.shape_cast %35 : vector<16x16x64xf32> to vector<256x64xf32>
      %c7_i32_40 = arith.constant 7 : i32
      %37 = arith.muli %32, %c7_i32_40 : i32
      %c0_i32_41 = arith.constant 0 : i32
      %38 = arith.addi %37, %c0_i32_41 : i32
      %39 = arith.index_cast %38 : i32 to index
      %c0_42 = arith.constant 0 : index
      %c0_43 = arith.constant 0 : index
      %40 = vector.load %arg4[%39, %c0_42, %c0_43] : memref<49x64x64xf32, #tpu.memory_space<vmem>>, vector<1x64x64xf32>
      %41 = vector.shape_cast %40 : vector<1x64x64xf32> to vector<64x64xf32>
      %cst_44 = arith.constant dense<0.000000e+00> : vector<256x64xf32>
      %42 = tpu.matmul %36, %41, %cst_44 {dimension_numbers = #tpu.dot_dimension_numbers<[1], [0], [0], [1], [0, 0, 1, 1], [], []>} : vector<256x64xf32>, vector<64x64xf32>, vector<256x64xf32> -> vector<256x64xf32>
      %43 = arith.addf %33, %42 : vector<256x64xf32>
      %44 = arith.index_cast %32 : i32 to index
      %c1 = arith.constant 1 : index
      %c0_45 = arith.constant 0 : index
      %45 = vector.load %arg7[%44, %c1, %c0_45] : memref<22x22x64xf32, #tpu.memory_space<vmem>>, vector<16x16x64xf32>
      %46 = vector.shape_cast %45 : vector<16x16x64xf32> to vector<256x64xf32>
      %c7_i32_46 = arith.constant 7 : i32
      %47 = arith.muli %32, %c7_i32_46 : i32
      %c1_i32_47 = arith.constant 1 : i32
      %48 = arith.addi %47, %c1_i32_47 : i32
      %49 = arith.index_cast %48 : i32 to index
      %c0_48 = arith.constant 0 : index
      %c0_49 = arith.constant 0 : index
      %50 = vector.load %arg4[%49, %c0_48, %c0_49] : memref<49x64x64xf32, #tpu.memory_space<vmem>>, vector<1x64x64xf32>
      %51 = vector.shape_cast %50 : vector<1x64x64xf32> to vector<64x64xf32>
      %cst_50 = arith.constant dense<0.000000e+00> : vector<256x64xf32>
      %52 = tpu.matmul %46, %51, %cst_50 {dimension_numbers = #tpu.dot_dimension_numbers<[1], [0], [0], [1], [0, 0, 1, 1], [], []>} : vector<256x64xf32>, vector<64x64xf32>, vector<256x64xf32> -> vector<256x64xf32>
      %53 = arith.addf %43, %52 : vector<256x64xf32>
      %54 = arith.index_cast %32 : i32 to index
      %c2 = arith.constant 2 : index
      %c0_51 = arith.constant 0 : index
      %55 = vector.load %arg7[%54, %c2, %c0_51] : memref<22x22x64xf32, #tpu.memory_space<vmem>>, vector<16x16x64xf32>
      %56 = vector.shape_cast %55 : vector<16x16x64xf32> to vector<256x64xf32>
      %c7_i32_52 = arith.constant 7 : i32
      %57 = arith.muli %32, %c7_i32_52 : i32
      %c2_i32 = arith.constant 2 : i32
      %58 = arith.addi %57, %c2_i32 : i32
      %59 = arith.index_cast %58 : i32 to index
      %c0_53 = arith.constant 0 : index
      %c0_54 = arith.constant 0 : index
      %60 = vector.load %arg4[%59, %c0_53, %c0_54] : memref<49x64x64xf32, #tpu.memory_space<vmem>>, vector<1x64x64xf32>
      %61 = vector.shape_cast %60 : vector<1x64x64xf32> to vector<64x64xf32>
      %cst_55 = arith.constant dense<0.000000e+00> : vector<256x64xf32>
      %62 = tpu.matmul %56, %61, %cst_55 {dimension_numbers = #tpu.dot_dimension_numbers<[1], [0], [0], [1], [0, 0, 1, 1], [], []>} : vector<256x64xf32>, vector<64x64xf32>, vector<256x64xf32> -> vector<256x64xf32>
      %63 = arith.addf %53, %62 : vector<256x64xf32>
      %64 = arith.index_cast %32 : i32 to index
      %c3_56 = arith.constant 3 : index
      %c0_57 = arith.constant 0 : index
      %65 = vector.load %arg7[%64, %c3_56, %c0_57] : memref<22x22x64xf32, #tpu.memory_space<vmem>>, vector<16x16x64xf32>
      %66 = vector.shape_cast %65 : vector<16x16x64xf32> to vector<256x64xf32>
      %c7_i32_58 = arith.constant 7 : i32
      %67 = arith.muli %32, %c7_i32_58 : i32
      %c3_i32 = arith.constant 3 : i32
      %68 = arith.addi %67, %c3_i32 : i32
      %69 = arith.index_cast %68 : i32 to index
      %c0_59 = arith.constant 0 : index
      %c0_60 = arith.constant 0 : index
      %70 = vector.load %arg4[%69, %c0_59, %c0_60] : memref<49x64x64xf32, #tpu.memory_space<vmem>>, vector<1x64x64xf32>
      %71 = vector.shape_cast %70 : vector<1x64x64xf32> to vector<64x64xf32>
      %cst_61 = arith.constant dense<0.000000e+00> : vector<256x64xf32>
      %72 = tpu.matmul %66, %71, %cst_61 {dimension_numbers = #tpu.dot_dimension_numbers<[1], [0], [0], [1], [0, 0, 1, 1], [], []>} : vector<256x64xf32>, vector<64x64xf32>, vector<256x64xf32> -> vector<256x64xf32>
      %73 = arith.addf %63, %72 : vector<256x64xf32>
      %74 = arith.index_cast %32 : i32 to index
      %c4 = arith.constant 4 : index
      %c0_62 = arith.constant 0 : index
      %75 = vector.load %arg7[%74, %c4, %c0_62] : memref<22x22x64xf32, #tpu.memory_space<vmem>>, vector<16x16x64xf32>
      %76 = vector.shape_cast %75 : vector<16x16x64xf32> to vector<256x64xf32>
      %c7_i32_63 = arith.constant 7 : i32
      %77 = arith.muli %32, %c7_i32_63 : i32
      %c4_i32 = arith.constant 4 : i32
      %78 = arith.addi %77, %c4_i32 : i32
      %79 = arith.index_cast %78 : i32 to index
      %c0_64 = arith.constant 0 : index
      %c0_65 = arith.constant 0 : index
      %80 = vector.load %arg4[%79, %c0_64, %c0_65] : memref<49x64x64xf32, #tpu.memory_space<vmem>>, vector<1x64x64xf32>
      %81 = vector.shape_cast %80 : vector<1x64x64xf32> to vector<64x64xf32>
      %cst_66 = arith.constant dense<0.000000e+00> : vector<256x64xf32>
      %82 = tpu.matmul %76, %81, %cst_66 {dimension_numbers = #tpu.dot_dimension_numbers<[1], [0], [0], [1], [0, 0, 1, 1], [], []>} : vector<256x64xf32>, vector<64x64xf32>, vector<256x64xf32> -> vector<256x64xf32>
      %83 = arith.addf %73, %82 : vector<256x64xf32>
      %84 = arith.index_cast %32 : i32 to index
      %c5 = arith.constant 5 : index
      %c0_67 = arith.constant 0 : index
      %85 = vector.load %arg7[%84, %c5, %c0_67] : memref<22x22x64xf32, #tpu.memory_space<vmem>>, vector<16x16x64xf32>
      %86 = vector.shape_cast %85 : vector<16x16x64xf32> to vector<256x64xf32>
      %c7_i32_68 = arith.constant 7 : i32
      %87 = arith.muli %32, %c7_i32_68 : i32
      %c5_i32 = arith.constant 5 : i32
      %88 = arith.addi %87, %c5_i32 : i32
      %89 = arith.index_cast %88 : i32 to index
      %c0_69 = arith.constant 0 : index
      %c0_70 = arith.constant 0 : index
      %90 = vector.load %arg4[%89, %c0_69, %c0_70] : memref<49x64x64xf32, #tpu.memory_space<vmem>>, vector<1x64x64xf32>
      %91 = vector.shape_cast %90 : vector<1x64x64xf32> to vector<64x64xf32>
      %cst_71 = arith.constant dense<0.000000e+00> : vector<256x64xf32>
      %92 = tpu.matmul %86, %91, %cst_71 {dimension_numbers = #tpu.dot_dimension_numbers<[1], [0], [0], [1], [0, 0, 1, 1], [], []>} : vector<256x64xf32>, vector<64x64xf32>, vector<256x64xf32> -> vector<256x64xf32>
      %93 = arith.addf %83, %92 : vector<256x64xf32>
      %94 = arith.index_cast %32 : i32 to index
      %c6 = arith.constant 6 : index
      %c0_72 = arith.constant 0 : index
      %95 = vector.load %arg7[%94, %c6, %c0_72] : memref<22x22x64xf32, #tpu.memory_space<vmem>>, vector<16x16x64xf32>
      %96 = vector.shape_cast %95 : vector<16x16x64xf32> to vector<256x64xf32>
      %c7_i32_73 = arith.constant 7 : i32
      %97 = arith.muli %32, %c7_i32_73 : i32
      %c6_i32 = arith.constant 6 : i32
      %98 = arith.addi %97, %c6_i32 : i32
      %99 = arith.index_cast %98 : i32 to index
      %c0_74 = arith.constant 0 : index
      %c0_75 = arith.constant 0 : index
      %100 = vector.load %arg4[%99, %c0_74, %c0_75] : memref<49x64x64xf32, #tpu.memory_space<vmem>>, vector<1x64x64xf32>
      %101 = vector.shape_cast %100 : vector<1x64x64xf32> to vector<64x64xf32>
      %cst_76 = arith.constant dense<0.000000e+00> : vector<256x64xf32>
      %102 = tpu.matmul %96, %101, %cst_76 {dimension_numbers = #tpu.dot_dimension_numbers<[1], [0], [0], [1], [0, 0, 1, 1], [], []>} : vector<256x64xf32>, vector<64x64xf32>, vector<256x64xf32> -> vector<256x64xf32>
      %103 = arith.addf %93, %102 : vector<256x64xf32>
      %c0_77 = arith.constant 0 : index
      %c0_78 = arith.constant 0 : index
      %104 = vector.load %arg8[%c0_77, %c0_78] : memref<256x64xf32, #tpu.memory_space<vmem>>, vector<256x64xf32>
      %105 = arith.addf %104, %103 : vector<256x64xf32>
      %c0_79 = arith.constant 0 : index
      %c0_80 = arith.constant 0 : index
      %106 = vector.load %arg8[%c0_79, %c0_80] : memref<256x64xf32, #tpu.memory_space<vmem>>, vector<256x64xf32>
      tpu.vector_store %arg8[%c0_79, %c0_80], %105 {strides = array<i32>} : memref<256x64xf32, #tpu.memory_space<vmem>>, vector<256x64xf32>,
    }
    %c7_i32_28 = arith.constant 7 : i32
    %c0_29 = arith.constant 0 : index
    %c0_30 = arith.constant 0 : index
    %25 = vector.load %arg8[%c0_29, %c0_30] : memref<256x64xf32, #tpu.memory_space<vmem>>, vector<256x64xf32>
    %cst_31 = arith.constant 0.000000e+00 : f32
    %26 = vector.broadcast %cst_31 : f32 to vector<256x64xf32>
    %27 = arith.maximumf %25, %26 : vector<256x64xf32>
    %c0_32 = arith.constant 0 : index
    %c0_33 = arith.constant 0 : index
    %c0_34 = arith.constant 0 : index
    %28 = vector.load %arg6[%c0_32, %c0_33, %c0_34] : memref<1x256x64xf32, #tpu.memory_space<vmem>>, vector<1x256x64xf32>
    %29 = vector.shape_cast %28 : vector<1x256x64xf32> to vector<256x64xf32>
    %30 = vector.shape_cast %27 : vector<256x64xf32> to vector<1x256x64xf32>
    tpu.vector_store %arg6[%c0_32, %c0_33, %c0_34], %30 {strides = array<i32>} : memref<1x256x64xf32, #tpu.memory_space<vmem>>, vector<1x256x64xf32>,
    return
  }
  func.func @transform_0(%arg0: i32) -> (i32, i32, i32) {
    %c0_i32 = arith.constant 0 : i32
    %c0_i32_0 = arith.constant 0 : i32
    %c0_i32_1 = arith.constant 0 : i32
    return %arg0, %c0_i32, %c0_i32_0 : i32, i32, i32
  }
  func.func @transform_1(%arg0: i32) -> (i32, i32) {
    %c0_i32 = arith.constant 0 : i32
    %c0_i32_0 = arith.constant 0 : i32
    %c0_i32_1 = arith.constant 0 : i32
    return %c0_i32, %c0_i32_0 : i32, i32
  }
  func.func @transform_2(%arg0: i32) -> (i32, i32) {
    %c0_i32 = arith.constant 0 : i32
    %c0_i32_0 = arith.constant 0 : i32
    %c0_i32_1 = arith.constant 0 : i32
    return %c0_i32, %c0_i32_0 : i32, i32
  }
  func.func @transform_3(%arg0: i32) -> (i32, i32, i32) {
    %c0_i32 = arith.constant 0 : i32
    %c0_i32_0 = arith.constant 0 : i32
    %c0_i32_1 = arith.constant 0 : i32
    %c0_i32_2 = arith.constant 0 : i32
    return %c0_i32, %c0_i32_0, %c0_i32_1 : i32, i32, i32
  }
  func.func @transform_4(%arg0: i32) -> (i32, i32) {
    %c0_i32 = arith.constant 0 : i32
    %c0_i32_0 = arith.constant 0 : i32
    %c0_i32_1 = arith.constant 0 : i32
    return %c0_i32, %c0_i32_0 : i32, i32
  }
  func.func @transform_5(%arg0: i32) -> (i32, i32, i32) {
    %c0_i32 = arith.constant 0 : i32
    %c0_i32_0 = arith.constant 0 : i32
    %c0_i32_1 = arith.constant 0 : i32
    return %arg0, %c0_i32, %c0_i32_0 : i32, i32, i32
  }
}

</mosaic_0001>

<llo_original>
// kernel: ms_block.1
$region0: #{ms_block.1}
  #allocation0 [shape = 'u32[]', space=smem, size = 0x4, offset = 0x4, fixed_abs, tag = 'smem constant byte address 0x4 - core index']
  #allocation1 [shape = 'u32[72,128]{1,0:T(1,128)}', space=vmem, size = 0x9000, scoped, tag = 'internal scratch']
  #allocation2 [shape = 'f32[22,22,64]{2,1,0:T(8,128)}', space=vmem, size = 0x42000, scoped, tag = 'scratch operand']
  #allocation3 [shape = 'f32[256,64]{1,0:T(8,128)}', space=vmem, size = 0x20000, scoped, tag = 'scratch operand']
  %s0 = inlined_call_operand.vmem [shape: f32[2,4,256], index: 0, kind: input, shape index: {}]
  %s1 = inlined_call_operand.vmem [shape: f32[64,4], index: 1, kind: input, shape index: {}]
  %s2 = inlined_call_operand.vmem [shape: f32[1,64], index: 2, kind: input, shape index: {}]
  %s3 = inlined_call_operand.vmem [shape: f32[49,64,64], index: 3, kind: input, shape index: {}]
  %s4 = inlined_call_operand.vmem [shape: f32[1,64], index: 4, kind: input, shape index: {}]
  %s5 = inlined_call_operand.hbm [shape: f32[2,256,64], index: 5, kind: output, shape index: {}]
  %s6 = sld [smem:[#allocation0]]
  $region60: #{ms_block.1} parent=0
    _
  %s8 = ssub.s32 1, %s6
  %s9 = scalar_select 0, %s8, %s6
  $region1: #{ms_block.1} parent=0
    #allocation4 [shape = 'u8[262144]{0}', space=vmem, size = 0x40000, scoped, tag = 'output window, operand 0']
    #allocation5 [shape = 's32[2]{0}', space=sflag, size = 0x8, scoped, tag = 'scoped memory for ms_block.1']
    %10 = vsyncpa [#allocation5], 0
    %s11 = scalar_lea.sflag [#allocation5], 1
    %12 = vsyncpa %s11, 0
    loop: start=0, step=1, limit=4
    $region2: #{ms_block.1} parent=1 // loop_pre_header
      _
    $region3: #{ms_block.1} parent=1 // loop_header
      %s14 = sphi 0, %s18
      %p15 = scmp.ge.s32.totalorder %s14, 4
      %s24 = sphi 0, %s26
      %s27 = sphi 0, %s24
      %s28 = sphi 0, %s27
      %s44 = sphi 0, %s28
      %s48 = sphi 0, %s48
      %s50 = sphi 0, %s48
      %s51 = sphi 0, %s50
      %s65 = sphi 0, %s51
      %s69 = sphi 0, %s69
      %s71 = sphi 0, %s69
      %s72 = sphi 0, %s71
      %s86 = sphi 0, %s72
      %s90 = sphi 0, %s90
      %s92 = sphi 0, %s90
      %s93 = sphi 0, %s92
      %s107 = sphi 0, %s93
      %s111 = sphi 0, %s111
      %s113 = sphi 0, %s111
      %s114 = sphi 0, %s113
      %s128 = sphi 0, %s114
      %s134 = sphi 0, %s136
      %s137 = sphi 0, %s134
      %s138 = sphi 0, %s137
      %s154 = sphi 0, %s138
    $region4: #{ms_block.1} parent=1 // loop_header_branch
      %17 = sbr.rel (%p15) target = $region8
    $region5: #{ms_block.1} parent=1 // loop_body
      %s19 = ssub.s32 %s14, 1
      %s20 = ssub.s32 %s14, 2
      %s21 = sadd.s32 %s14, 1
      %s22 = ssub.s32 %s14, %s21
      %p23 = scmp.eq.s32.totalorder %s22, 0
      %s25 = sadd.s32 %s24, 1
      %s26 = scalar_select %p23, %s24, %s25
      %p29 = pneg %p23
      %p30 = scmp.eq.s32.totalorder %s14, 1
      %p31 = por %p29, %p30
      %p32 = scmp.ne.s32.totalorder %s24, %s27
      %p33 = scmp.eq.s32.totalorder %s14, 0
      %p34 = por %p32, %p33
      %p35 = scmp.ne.s32.totalorder %s24, %s27
      %p36 = scmp.eq.s32.totalorder %s19, 1
      %p37 = por %p35, %p36
      %p38 = scmp.ne.s32.totalorder %s27, %s28
      %p39 = scmp.eq.s32.totalorder %s19, 0
      %p40 = por %p38, %p39
      %p41 = scmp.ne.s32.totalorder %s27, %s28
      %p42 = scmp.eq.s32.totalorder %s20, 1
      %p43 = por %p41, %p42
      %p45 = scmp.ne.s32.totalorder %s28, %s44
      %p46 = scmp.eq.s32.totalorder %s20, 0
      %p47 = por %p45, %p46
      %s49 = sadd.s32 %s48, 1
      %p52 = scmp.eq.s32.totalorder %s14, 1
      %p53 = scmp.ne.s32.totalorder %s48, %s50
      %p54 = scmp.eq.s32.totalorder %s14, 0
      %p55 = por %p53, %p54
      %p56 = scmp.ne.s32.totalorder %s48, %s50
      %p57 = scmp.eq.s32.totalorder %s19, 1
      %p58 = por %p56, %p57
      %p59 = scmp.ne.s32.totalorder %s50, %s51
      %p60 = scmp.eq.s32.totalorder %s19, 0
      %p61 = por %p59, %p60
      %p62 = scmp.ne.s32.totalorder %s50, %s51
      %p63 = scmp.eq.s32.totalorder %s20, 1
      %p64 = por %p62, %p63
      %p66 = scmp.ne.s32.totalorder %s51, %s65
      %p67 = scmp.eq.s32.totalorder %s20, 0
      %p68 = por %p66, %p67
      %s70 = sadd.s32 %s69, 1
      %p73 = scmp.eq.s32.totalorder %s14, 1
      %p74 = scmp.ne.s32.totalorder %s69, %s71
      %p75 = scmp.eq.s32.totalorder %s14, 0
      %p76 = por %p74, %p75
      %p77 = scmp.ne.s32.totalorder %s69, %s71
      %p78 = scmp.eq.s32.totalorder %s19, 1
      %p79 = por %p77, %p78
      %p80 = scmp.ne.s32.totalorder %s71, %s72
      %p81 = scmp.eq.s32.totalorder %s19, 0
      %p82 = por %p80, %p81
      %p83 = scmp.ne.s32.totalorder %s71, %s72
      %p84 = scmp.eq.s32.totalorder %s20, 1
      %p85 = por %p83, %p84
      %p87 = scmp.ne.s32.totalorder %s72, %s86
      %p88 = scmp.eq.s32.totalorder %s20, 0
      %p89 = por %p87, %p88
      %s91 = sadd.s32 %s90, 1
      %p94 = scmp.eq.s32.totalorder %s14, 1
      %p95 = scmp.ne.s32.totalorder %s90, %s92
      %p96 = scmp.eq.s32.totalorder %s14, 0
      %p97 = por %p95, %p96
      %p98 = scmp.ne.s32.totalorder %s90, %s92
      %p99 = scmp.eq.s32.totalorder %s19, 1
      %p100 = por %p98, %p99
      %p101 = scmp.ne.s32.totalorder %s92, %s93
      %p102 = scmp.eq.s32.totalorder %s19, 0
      %p103 = por %p101, %p102
      %p104 = scmp.ne.s32.totalorder %s92, %s93
      %p105 = scmp.eq.s32.totalorder %s20, 1
      %p106 = por %p104, %p105
      %p108 = scmp.ne.s32.totalorder %s93, %s107
      %p109 = scmp.eq.s32.totalorder %s20, 0
      %p110 = por %p108, %p109
      %s112 = sadd.s32 %s111, 1
      %p115 = scmp.eq.s32.totalorder %s14, 1
      %p116 = scmp.ne.s32.totalorder %s111, %s113
      %p117 = scmp.eq.s32.totalorder %s14, 0
      %p118 = por %p116, %p117
      %p119 = scmp.ne.s32.totalorder %s111, %s113
      %p120 = scmp.eq.s32.totalorder %s19, 1
      %p121 = por %p119, %p120
      %p122 = scmp.ne.s32.totalorder %s113, %s114
      %p123 = scmp.eq.s32.totalorder %s19, 0
      %p124 = por %p122, %p123
      %p125 = scmp.ne.s32.totalorder %s113, %s114
      %p126 = scmp.eq.s32.totalorder %s20, 1
      %p127 = por %p125, %p126
      %p129 = scmp.ne.s32.totalorder %s114, %s128
      %p130 = scmp.eq.s32.totalorder %s20, 0
      %p131 = por %p129, %p130
      %s132 = ssub.s32 %s14, %s21
      %p133 = scmp.eq.s32.totalorder %s132, 0
      %s135 = sadd.s32 %s134, 1
      %s136 = scalar_select %p133, %s134, %s135
      %p139 = pneg %p133
      %p140 = scmp.eq.s32.totalorder %s14, 1
      %p141 = por %p139, %p140
      %p142 = scmp.ne.s32.totalorder %s134, %s137
      %p143 = scmp.eq.s32.totalorder %s14, 0
      %p144 = por %p142, %p143
      %p145 = scmp.ne.s32.totalorder %s134, %s137
      %p146 = scmp.eq.s32.totalorder %s19, 1
      %p147 = por %p145, %p146
      %p148 = scmp.ne.s32.totalorder %s137, %s138
      %p149 = scmp.eq.s32.totalorder %s19, 0
      %p150 = por %p148, %p149
      %p151 = scmp.ne.s32.totalorder %s137, %s138
      %p152 = scmp.eq.s32.totalorder %s20, 1
      %p153 = por %p151, %p152
      %p155 = scmp.ne.s32.totalorder %s138, %s154
      %p156 = scmp.eq.s32.totalorder %s20, 0
      %p157 = por %p155, %p156
      %p158 = scmp.le.s32.totalorder 1, %s14
      %p159 = scmp.lt.s32.totalorder %s14, 3
      %p160 = pnand %p158, %p159
      %p161 = pneg %p160
      // Predicated region
      $region9: #{ms_block.1} parent=5 // pred_check
        _
      $region10: #{ms_block.1} parent=5 // pred_check_branch
        %163 = sbr.rel (%p160) target = $region12
      $region11: #{ms_block.1} parent=5 // pred_region
        %s164 = ssub.s32 %s14, 1
        // Predicated region
        $region13: #{ms_block.1} parent=11 // pred_check
          %p165 = pneg %p61
        $region14: #{ms_block.1} parent=11 // pred_check_branch
          %167 = sbr.rel (%p165) target = $region16
        $region15: #{ms_block.1} parent=11 // pred_region
          _
        $region16: #{ms_block.1} parent=11 // pred_fallthru
          _
        // Predicated region
        $region17: #{ms_block.1} parent=11 // pred_check
          %p168 = pneg %p82
        $region18: #{ms_block.1} parent=11 // pred_check_branch
          %170 = sbr.rel (%p168) target = $region20
        $region19: #{ms_block.1} parent=11 // pred_region
          _
        $region20: #{ms_block.1} parent=11 // pred_fallthru
          _
        // Predicated region
        $region21: #{ms_block.1} parent=11 // pred_check
          %p171 = pneg %p103
        $region22: #{ms_block.1} parent=11 // pred_check_branch
          %173 = sbr.rel (%p171) target = $region24
        $region23: #{ms_block.1} parent=11 // pred_region
          _
        $region24: #{ms_block.1} parent=11 // pred_fallthru
          _
        // Predicated region
        $region25: #{ms_block.1} parent=11 // pred_check
          %p174 = pneg %p124
        $region26: #{ms_block.1} parent=11 // pred_check_branch
          %176 = sbr.rel (%p174) target = $region28
        $region27: #{ms_block.1} parent=11 // pred_region
          _
        $region28: #{ms_block.1} parent=11 // pred_fallthru
          _
      $region12: #{ms_block.1} parent=5 // pred_fallthru
        _
      %p177 = scmp.lt.s32.totalorder %s14, 2
      // Predicated region
      $region29: #{ms_block.1} parent=5 // pred_check
        %p178 = pneg %p177
      $region30: #{ms_block.1} parent=5 // pred_check_branch
        %180 = sbr.rel (%p178) target = $region32
      $region31: #{ms_block.1} parent=5 // pred_region
        // Predicated region
        $region33: #{ms_block.1} parent=31 // pred_check
          %p181 = pneg %p34
        $region34: #{ms_block.1} parent=31 // pred_check_branch
          %183 = sbr.rel (%p181) target = $region36
        $region35: #{ms_block.1} parent=31 // pred_region
          %p184 = scmp.lt.s32.totalorder %s14, 1
          %s185 = scalar_select %p184, %s14, 1
          %s186 = smul.addr %s185, 2
          %s187 = smul.addr %s186, 4
          %s188 = scalar_lea.vmem %s0, %s187
        $region36: #{ms_block.1} parent=31 // pred_fallthru
          _
      $region32: #{ms_block.1} parent=5 // pred_fallthru
        _
      %p189 = scmp.le.s32.totalorder 1, %s14
      %p190 = scmp.lt.s32.totalorder %s14, 3
      %p191 = pnand %p189, %p190
      %p192 = pneg %p191
      // Predicated region
      $region37: #{ms_block.1} parent=5 // pred_check
        _
      $region38: #{ms_block.1} parent=5 // pred_check_branch
        %194 = sbr.rel (%p191) target = $region40
      $region39: #{ms_block.1} parent=5 // pred_region
        %s195 = ssub.s32 %s14, 1
        %p196 = scmp.lt.s32.totalorder %s19, 1
        %s197 = scalar_select %p196, %s19, 1
        %s198 = smul.addr %s197, 2
        %s199 = smul.addr %s198, 4
        %s200 = scalar_lea.vmem %s0, %s199
        %p201 = pneg %p40
        %p202 = pneg %p37
        %p203 = pneg %p61
        %p204 = pneg %p58
        %p205 = pneg %p82
        %p206 = pneg %p79
        %p207 = pneg %p103
        %p208 = pneg %p100
        %p209 = pneg %p124
        %p210 = pneg %p121
        %p211 = pneg %p150
        %p212 = pneg %p147
        %s213 = sand.u32 %s137, 1
        %s214 = scalar_lea.sflag [#allocation5], %s213
        %s215 = sand.u32 %s137, 1
        %s216 = smul.addr %s215, 256
        %s217 = scalar_lea.vmem [#allocation4], %s216
        %p218 = scmp.lt.s32.totalorder %s19, 1
        %s219 = scalar_select %p218, %s19, 1
        %s220 = smul.addr %s219, 2
        %s221 = smul.addr %s220, 4
        %s222 = scalar_lea.vmem %s0, %s221
        %vm223 = vcmask 523264
        %224 = vst.msk [vmem:[#allocation2] sm:$0xff] %vm223, 0.0
        %225 = vst.msk [vmem:[#allocation2 + $0x8] sm:$0xff] %vm223, 0.0
        %vm226 = vcmask 521216
        %227 = vst.msk [vmem:[#allocation2 + $0x10] sm:$0x3f] %vm226, 0.0
        %228 = vst.msk [vmem:[#allocation2 + $0x18] sm:$0xff] %vm223, 0.0
        %229 = vst.msk [vmem:[#allocation2 + $0x20] sm:$0xff] %vm223, 0.0
        %230 = vst.msk [vmem:[#allocation2 + $0x28] sm:$0x3f] %vm226, 0.0
        %231 = vst.msk [vmem:[#allocation2 + $0x30] sm:$0xff] %vm223, 0.0
        %232 = vst.msk [vmem:[#allocation2 + $0x38] sm:$0xff] %vm223, 0.0
        %233 = vst.msk [vmem:[#allocation2 + $0x40] sm:$0x3f] %vm226, 0.0
        %s234 = scalar_lea.vmem [#allocation2], 456
        %235 = vst.msk [vmem:[%s234] sm:$0xff] %vm223, 0.0
        %236 = vst.msk [vmem:[%s234 + $0x8] sm:$0xff] %vm223, 0.0
        %237 = vst.msk [vmem:[%s234 + $0x10] sm:$0x3f] %vm226, 0.0
        %238 = vst.msk [vmem:[%s234 + $0x18] sm:$0xff] %vm223, 0.0
        %239 = vst.msk [vmem:[%s234 + $0x20] sm:$0xff] %vm223, 0.0
        %240 = vst.msk [vmem:[%s234 + $0x28] sm:$0x3f] %vm226, 0.0
        %241 = vst.msk [vmem:[%s234 + $0x30] sm:$0xff] %vm223, 0.0
        %242 = vst.msk [vmem:[%s234 + $0x38] sm:$0xff] %vm223, 0.0
        %243 = vst.msk [vmem:[%s234 + $0x40] sm:$0x3f] %vm226, 0.0
        %s244 = scalar_lea.vmem [#allocation2], 72
        %vm245 = vcmask 518144
        %246 = vst.msk [vmem:[%s244] sm:$0x7] %vm245, 0.0
        %247 = vst.msk [vmem:[%s244 + $0x18] sm:$0x7] %vm245, 0.0
        %248 = vst.msk [vmem:[%s244 + $0x30] sm:$0x7] %vm245, 0.0
        %249 = vst.msk [vmem:[%s244 + $0x48] sm:$0x7] %vm245, 0.0
        %250 = vst.msk [vmem:[%s244 + $0x60] sm:$0x7] %vm245, 0.0
        %251 = vst.msk [vmem:[%s244 + $0x78] sm:$0x7] %vm245, 0.0
        %252 = vst.msk [vmem:[%s244 + $0x90] sm:$0x7] %vm245, 0.0
        %253 = vst.msk [vmem:[%s244 + $0xa8] sm:$0x7] %vm245, 0.0
        %254 = vst.msk [vmem:[%s244 + $0xc0] sm:$0x7] %vm245, 0.0
        %255 = vst.msk [vmem:[%s244 + $0xd8] sm:$0x7] %vm245, 0.0
        %256 = vst.msk [vmem:[%s244 + $0xf0] sm:$0x7] %vm245, 0.0
        %257 = vst.msk [vmem:[%s244 + $0x108] sm:$0x7] %vm245, 0.0
        %258 = vst.msk [vmem:[%s244 + $0x120] sm:$0x7] %vm245, 0.0
        %259 = vst.msk [vmem:[%s244 + $0x138] sm:$0x7] %vm245, 0.0
        %260 = vst.msk [vmem:[%s244 + $0x150] sm:$0x7] %vm245, 0.0
        %261 = vst.msk [vmem:[%s244 + $0x168] sm:$0x7] %vm245, 0.0
        %262 = vst.msk [vmem:[%s244 + $0x13] sm:$0x7] %vm245, 0.0
        %263 = vst.msk [vmem:[%s244 + $0x2b] sm:$0x7] %vm245, 0.0
        %264 = vst.msk [vmem:[%s244 + $0x43] sm:$0x7] %vm245, 0.0
        %265 = vst.msk [vmem:[%s244 + $0x5b] sm:$0x7] %vm245, 0.0
        %266 = vst.msk [vmem:[%s244 + $0x73] sm:$0x7] %vm245, 0.0
        %267 = vst.msk [vmem:[%s244 + $0x8b] sm:$0x7] %vm245, 0.0
        %268 = vst.msk [vmem:[%s244 + $0xa3] sm:$0x7] %vm245, 0.0
        %269 = vst.msk [vmem:[%s244 + $0xbb] sm:$0x7] %vm245, 0.0
        %270 = vst.msk [vmem:[%s244 + $0xd3] sm:$0x7] %vm245, 0.0
        %271 = vst.msk [vmem:[%s244 + $0xeb] sm:$0x7] %vm245, 0.0
        %272 = vst.msk [vmem:[%s244 + $0x103] sm:$0x7] %vm245, 0.0
        %273 = vst.msk [vmem:[%s244 + $0x11b] sm:$0x7] %vm245, 0.0
        %274 = vst.msk [vmem:[%s244 + $0x133] sm:$0x7] %vm245, 0.0
        %275 = vst.msk [vmem:[%s244 + $0x14b] sm:$0x7] %vm245, 0.0
        %276 = vst.msk [vmem:[%s244 + $0x163] sm:$0x7] %vm245, 0.0
        %277 = vst.msk [vmem:[%s244 + $0x17b] sm:$0x7] %vm245, 0.0
        %v278 = vld [vmem:[%s1] sm:$0xff]
        %v279 = vld [vmem:[%s1 + $0x8] sm:$0xff]
        %v280 = vld [vmem:[%s1 + $0x10] sm:$0xff]
        %v281 = vld [vmem:[%s1 + $0x18] sm:$0xff]
        %v282 = vld [vmem:[%s1 + $0x20] sm:$0xff]
        %v283 = vld [vmem:[%s1 + $0x28] sm:$0xff]
        %v284 = vld [vmem:[%s1 + $0x30] sm:$0xff]
        %v285 = vld [vmem:[%s1 + $0x38] sm:$0xff]
        %v286 = vld [vmem:[%s222] sm:$0xff]
        %288 = vst [vmem:[#allocation1] ss:$2 sm:$0xff] %v286
        %v289 = vld.sshfl [vmem:[#allocation1] sm:$0xff pattern:$0x75316420]
        %v290 = vld.sshfl [vmem:[#allocation1 + $0x8] sm:$0xff pattern:$0x75316420]
        %vm291 = vcmask 31744
        %v293 = vsel %vm291, %v278, 0
        %v296 = vsel %vm291, %v279, 0
        %v299 = vsel %vm291, %v280, 0
        %v302 = vsel %vm291, %v281, 0
        %v305 = vsel %vm291, %v282, 0
        %v308 = vsel %vm291, %v283, 0
        %v311 = vsel %vm291, %v284, 0
        %v314 = vsel %vm291, %v285, 0
        %vm316 = vcmask 1043456
        %v317 = vsel %vm316, %v289, 0
        %v319 = vsel %vm316, %v290, 0
        %321 = vmatpush.msra.mxu0 0.0
        %322 = vmatpush.msra.mxu0 0.0
        %323 = vmatpush.msra.mxu0 0.0
        %324 = vmatpush.msra.mxu0 0.0
        %325 = vmatpush.msra.mxu0 0.0
        %326 = vmatpush.msra.mxu0 0.0
        %327 = vmatpush.msra.mxu0 0.0
        %328 = vmatpush.msra.mxu0 0.0
        %329 = vmatpush.msra.mxu0 0.0
        %330 = vmatpush.msra.mxu0 0.0
        %331 = vmatpush.msra.mxu0 0.0
        %332 = vmatpush.msra.mxu0 0.0
        %333 = vmatpush.msra.mxu0 0.0
        %334 = vmatpush.msra.mxu0 0.0
        %335 = vmatpush.msra.mxu0 0.0
        %336 = vmatpush.msra.mxu0 %v317
        %337 = vmatmul.f32.gmra.mxu0 %v293
        %v338 = vpop.f32.mrf.mxu0
        %v339 = vadd.f32 0.0, %v338
        %340 = vmatmul.f32.gmra.mxu0 %v296
        %v341 = vpop.f32.mrf.mxu0
        %v342 = vadd.f32 0.0, %v341
        %343 = vmatmul.f32.gmra.mxu0 %v299
        %v344 = vpop.f32.mrf.mxu0
        %v345 = vadd.f32 0.0, %v344
        %346 = vmatmul.f32.gmra.mxu0 %v302
        %v347 = vpop.f32.mrf.mxu0
        %v348 = vadd.f32 0.0, %v347
        %349 = vmatmul.f32.gmra.mxu0 %v305
        %v350 = vpop.f32.mrf.mxu0
        %v351 = vadd.f32 0.0, %v350
        %352 = vmatmul.f32.gmra.mxu0 %v308
        %v353 = vpop.f32.mrf.mxu0
        %v354 = vadd.f32 0.0, %v353
        %355 = vmatmul.f32.gmra.mxu0 %v311
        %v356 = vpop.f32.mrf.mxu0
        %v357 = vadd.f32 0.0, %v356
        %358 = vmatmul.f32.gmra.mxu0 %v314
        %v359 = vpop.f32.mrf.mxu0
        %v360 = vadd.f32 0.0, %v359
        %361 = vdwg.mxu0
        %362 = vmatpush.msra.mxu0 0.0
        %363 = vmatpush.msra.mxu0 0.0
        %364 = vmatpush.msra.mxu0 0.0
        %365 = vmatpush.msra.mxu0 0.0
        %366 = vmatpush.msra.mxu0 0.0
        %367 = vmatpush.msra.mxu0 0.0
        %368 = vmatpush.msra.mxu0 0.0
        %369 = vmatpush.msra.mxu0 0.0
        %370 = vmatpush.msra.mxu0 0.0
        %371 = vmatpush.msra.mxu0 0.0
        %372 = vmatpush.msra.mxu0 0.0
        %373 = vmatpush.msra.mxu0 0.0
        %374 = vmatpush.msra.mxu0 0.0
        %375 = vmatpush.msra.mxu0 0.0
        %376 = vmatpush.msra.mxu0 0.0
        %377 = vmatpush.msra.mxu0 %v319
        %378 = vmatmul.f32.gmra.mxu0 %v293
        %v379 = vpop.f32.mrf.mxu0
        %v380 = vadd.f32 0.0, %v379
        %381 = vmatmul.f32.gmra.mxu0 %v296
        %v382 = vpop.f32.mrf.mxu0
        %v383 = vadd.f32 0.0, %v382
        %384 = vmatmul.f32.gmra.mxu0 %v299
        %v385 = vpop.f32.mrf.mxu0
        %v386 = vadd.f32 0.0, %v385
        %387 = vmatmul.f32.gmra.mxu0 %v302
        %v388 = vpop.f32.mrf.mxu0
        %v389 = vadd.f32 0.0, %v388
        %390 = vmatmul.f32.gmra.mxu0 %v305
        %v391 = vpop.f32.mrf.mxu0
        %v392 = vadd.f32 0.0, %v391
        %393 = vmatmul.f32.gmra.mxu0 %v308
        %v394 = vpop.f32.mrf.mxu0
        %v395 = vadd.f32 0.0, %v394
        %396 = vmatmul.f32.gmra.mxu0 %v311
        %v397 = vpop.f32.mrf.mxu0
        %v398 = vadd.f32 0.0, %v397
        %399 = vmatmul.f32.gmra.mxu0 %v314
        %v400 = vpop.f32.mrf.mxu0
        %v401 = vadd.f32 0.0, %v400
        %402 = vdwg.mxu0
        %403 = vxpose.xlu0.b32.start [1/16] %v339, 128
        %404 = vxpose.xlu0.b32.cont [2/16] %v342, 128
        %405 = vxpose.xlu0.b32.cont [3/16] %v345, 128
        %406 = vxpose.xlu0.b32.cont [4/16] %v348, 128
        %407 = vxpose.xlu0.b32.cont [5/16] %v351, 128
        %408 = vxpose.xlu0.b32.cont [6/16] %v354, 128
        %409 = vxpose.xlu0.b32.cont [7/16] %v357, 128
        %410 = vxpose.xlu0.b32.cont [8/16] %v360, 128
        %411 = vxpose.xlu0.b32.cont [9/16] 0.0, 128
        %412 = vxpose.xlu0.b32.cont [10/16] 0.0, 128
        %413 = vxpose.xlu0.b32.cont [11/16] 0.0, 128
        %414 = vxpose.xlu0.b32.cont [12/16] 0.0, 128
        %415 = vxpose.xlu0.b32.cont [13/16] 0.0, 128
        %416 = vxpose.xlu0.b32.cont [14/16] 0.0, 128
        %417 = vxpose.xlu0.b32.cont [15/16] 0.0, 128
        %418 = vxpose.xlu0.b32.end [16/16] 0.0, 128
        %v419 = vpop.trf.xlu0
        %v420 = vpop.trf.xlu0
        %v421 = vpop.trf.xlu0
        %v422 = vpop.trf.xlu0
        %v423 = vpop.trf.xlu0
        %v424 = vpop.trf.xlu0
        %v425 = vpop.trf.xlu0
        %v426 = vpop.trf.xlu0
        %v427 = vpop.trf.xlu0
        %v428 = vpop.trf.xlu0
        %v429 = vpop.trf.xlu0
        %v430 = vpop.trf.xlu0
        %v431 = vpop.trf.xlu0
        %v432 = vpop.trf.xlu0
        %v433 = vpop.trf.xlu0
        %v434 = vpop.trf.xlu0
        %435 = vxpose.xlu0.b32.start [1/16] %v380, 128
        %436 = vxpose.xlu0.b32.cont [2/16] %v383, 128
        %437 = vxpose.xlu0.b32.cont [3/16] %v386, 128
        %438 = vxpose.xlu0.b32.cont [4/16] %v389, 128
        %439 = vxpose.xlu0.b32.cont [5/16] %v392, 128
        %440 = vxpose.xlu0.b32.cont [6/16] %v395, 128
        %441 = vxpose.xlu0.b32.cont [7/16] %v398, 128
        %442 = vxpose.xlu0.b32.cont [8/16] %v401, 128
        %443 = vxpose.xlu0.b32.cont [9/16] 0.0, 128
        %444 = vxpose.xlu0.b32.cont [10/16] 0.0, 128
        %445 = vxpose.xlu0.b32.cont [11/16] 0.0, 128
        %446 = vxpose.xlu0.b32.cont [12/16] 0.0, 128
        %447 = vxpose.xlu0.b32.cont [13/16] 0.0, 128
        %448 = vxpose.xlu0.b32.cont [14/16] 0.0, 128
        %449 = vxpose.xlu0.b32.cont [15/16] 0.0, 128
        %450 = vxpose.xlu0.b32.end [16/16] 0.0, 128
        %v451 = vpop.trf.xlu0
        %v452 = vpop.trf.xlu0
        %v453 = vpop.trf.xlu0
        %v454 = vpop.trf.xlu0
        %v455 = vpop.trf.xlu0
        %v456 = vpop.trf.xlu0
        %v457 = vpop.trf.xlu0
        %v458 = vpop.trf.xlu0
        %v459 = vpop.trf.xlu0
        %v460 = vpop.trf.xlu0
        %v461 = vpop.trf.xlu0
        %v462 = vpop.trf.xlu0
        %v463 = vpop.trf.xlu0
        %v464 = vpop.trf.xlu0
        %v465 = vpop.trf.xlu0
        %v466 = vpop.trf.xlu0
        %v467 = vld [vmem:[%s2] sm:$0x1]
        %v469 = vperm.slane %v467, 0
        %v471 = vadd.f32 %v419, %v469
        %v472 = vadd.f32 %v420, %v469
        %v473 = vadd.f32 %v421, %v469
        %v474 = vadd.f32 %v422, %v469
        %v475 = vadd.f32 %v423, %v469
        %v476 = vadd.f32 %v424, %v469
        %v477 = vadd.f32 %v425, %v469
        %v478 = vadd.f32 %v426, %v469
        %v479 = vadd.f32 %v427, %v469
        %v480 = vadd.f32 %v428, %v469
        %v481 = vadd.f32 %v429, %v469
        %v482 = vadd.f32 %v430, %v469
        %v483 = vadd.f32 %v431, %v469
        %v484 = vadd.f32 %v432, %v469
        %v485 = vadd.f32 %v433, %v469
        %v486 = vadd.f32 %v434, %v469
        %v487 = vadd.f32 %v451, %v469
        %v488 = vadd.f32 %v452, %v469
        %v489 = vadd.f32 %v453, %v469
        %v490 = vadd.f32 %v454, %v469
        %v491 = vadd.f32 %v455, %v469
        %v492 = vadd.f32 %v456, %v469
        %v493 = vadd.f32 %v457, %v469
        %v494 = vadd.f32 %v458, %v469
        %v495 = vadd.f32 %v459, %v469
        %v496 = vadd.f32 %v460, %v469
        %v497 = vadd.f32 %v461, %v469
        %v498 = vadd.f32 %v462, %v469
        %v499 = vadd.f32 %v463, %v469
        %v500 = vadd.f32 %v464, %v469
        %v501 = vadd.f32 %v465, %v469
        %v502 = vadd.f32 %v466, %v469
        %v503 = vmax.f32 %v471, 0.0
        %v504 = vmax.f32 %v472, 0.0
        %v505 = vmax.f32 %v473, 0.0
        %v506 = vmax.f32 %v474, 0.0
        %v507 = vmax.f32 %v475, 0.0
        %v508 = vmax.f32 %v476, 0.0
        %v509 = vmax.f32 %v477, 0.0
        %v510 = vmax.f32 %v478, 0.0
        %v511 = vmax.f32 %v479, 0.0
        %v512 = vmax.f32 %v480, 0.0
        %v513 = vmax.f32 %v481, 0.0
        %v514 = vmax.f32 %v482, 0.0
        %v515 = vmax.f32 %v483, 0.0
        %v516 = vmax.f32 %v484, 0.0
        %v517 = vmax.f32 %v485, 0.0
        %v518 = vmax.f32 %v486, 0.0
        %v519 = vmax.f32 %v487, 0.0
        %v520 = vmax.f32 %v488, 0.0
        %v521 = vmax.f32 %v489, 0.0
        %v522 = vmax.f32 %v490, 0.0
        %v523 = vmax.f32 %v491, 0.0
        %v524 = vmax.f32 %v492, 0.0
        %v525 = vmax.f32 %v493, 0.0
        %v526 = vmax.f32 %v494, 0.0
        %v527 = vmax.f32 %v495, 0.0
        %v528 = vmax.f32 %v496, 0.0
        %v529 = vmax.f32 %v497, 0.0
        %v530 = vmax.f32 %v498, 0.0
        %v531 = vmax.f32 %v499, 0.0
        %v532 = vmax.f32 %v500, 0.0
        %v533 = vmax.f32 %v501, 0.0
        %v534 = vmax.f32 %v502, 0.0
        %535 = vst.msk [vmem:[%s244 + $0x3] sm:$0xff] %vm223, %v503
        %536 = vst.msk [vmem:[%s244 + $0xb] sm:$0xff] %vm223, %v504
        %537 = vst.msk [vmem:[%s244 + $0x1b] sm:$0xff] %vm223, %v505
        %538 = vst.msk [vmem:[%s244 + $0x23] sm:$0xff] %vm223, %v506
        %539 = vst.msk [vmem:[%s244 + $0x33] sm:$0xff] %vm223, %v507
        %540 = vst.msk [vmem:[%s244 + $0x3b] sm:$0xff] %vm223, %v508
        %541 = vst.msk [vmem:[%s244 + $0x4b] sm:$0xff] %vm223, %v509
        %542 = vst.msk [vmem:[%s244 + $0x53] sm:$0xff] %vm223, %v510
        %543 = vst.msk [vmem:[%s244 + $0x63] sm:$0xff] %vm223, %v511
        %544 = vst.msk [vmem:[%s244 + $0x6b] sm:$0xff] %vm223, %v512
        %545 = vst.msk [vmem:[%s244 + $0x7b] sm:$0xff] %vm223, %v513
        %546 = vst.msk [vmem:[%s244 + $0x83] sm:$0xff] %vm223, %v514
        %547 = vst.msk [vmem:[%s244 + $0x93] sm:$0xff] %vm223, %v515
        %548 = vst.msk [vmem:[%s244 + $0x9b] sm:$0xff] %vm223, %v516
        %549 = vst.msk [vmem:[%s244 + $0xab] sm:$0xff] %vm223, %v517
        %550 = vst.msk [vmem:[%s244 + $0xb3] sm:$0xff] %vm223, %v518
        %551 = vst.msk [vmem:[%s244 + $0xc3] sm:$0xff] %vm223, %v519
        %552 = vst.msk [vmem:[%s244 + $0xcb] sm:$0xff] %vm223, %v520
        %553 = vst.msk [vmem:[%s244 + $0xdb] sm:$0xff] %vm223, %v521
        %554 = vst.msk [vmem:[%s244 + $0xe3] sm:$0xff] %vm223, %v522
        %555 = vst.msk [vmem:[%s244 + $0xf3] sm:$0xff] %vm223, %v523
        %556 = vst.msk [vmem:[%s244 + $0xfb] sm:$0xff] %vm223, %v524
        %557 = vst.msk [vmem:[%s244 + $0x10b] sm:$0xff] %vm223, %v525
        %558 = vst.msk [vmem:[%s244 + $0x113] sm:$0xff] %vm223, %v526
        %559 = vst.msk [vmem:[%s244 + $0x123] sm:$0xff] %vm223, %v527
        %560 = vst.msk [vmem:[%s244 + $0x12b] sm:$0xff] %vm223, %v528
        %561 = vst.msk [vmem:[%s244 + $0x13b] sm:$0xff] %vm223, %v529
        %562 = vst.msk [vmem:[%s244 + $0x143] sm:$0xff] %vm223, %v530
        %563 = vst.msk [vmem:[%s244 + $0x153] sm:$0xff] %vm223, %v531
        %564 = vst.msk [vmem:[%s244 + $0x15b] sm:$0xff] %vm223, %v532
        %565 = vst.msk [vmem:[%s244 + $0x16b] sm:$0xff] %vm223, %v533
        %566 = vst.msk [vmem:[%s244 + $0x173] sm:$0xff] %vm223, %v534
        %v567 = vld [vmem:[%s4] sm:$0x1]
        %v569 = vperm.slane %v567, 0
        %571 = vst.msk [vmem:[#allocation3] sm:$0xff] %vm223, %v569
        %572 = vst.msk [vmem:[#allocation3 + $0x8] sm:$0xff] %vm223, %v569
        %573 = vst.msk [vmem:[#allocation3 + $0x10] sm:$0xff] %vm223, %v569
        %574 = vst.msk [vmem:[#allocation3 + $0x18] sm:$0xff] %vm223, %v569
        %575 = vst.msk [vmem:[#allocation3 + $0x20] sm:$0xff] %vm223, %v569
        %576 = vst.msk [vmem:[#allocation3 + $0x28] sm:$0xff] %vm223, %v569
        %577 = vst.msk [vmem:[#allocation3 + $0x30] sm:$0xff] %vm223, %v569
        %578 = vst.msk [vmem:[#allocation3 + $0x38] sm:$0xff] %vm223, %v569
        %579 = vst.msk [vmem:[#allocation3 + $0x40] sm:$0xff] %vm223, %v569
        %580 = vst.msk [vmem:[#allocation3 + $0x48] sm:$0xff] %vm223, %v569
        %581 = vst.msk [vmem:[#allocation3 + $0x50] sm:$0xff] %vm223, %v569
        %582 = vst.msk [vmem:[#allocation3 + $0x58] sm:$0xff] %vm223, %v569
        %583 = vst.msk [vmem:[#allocation3 + $0x60] sm:$0xff] %vm223, %v569
        %584 = vst.msk [vmem:[#allocation3 + $0x68] sm:$0xff] %vm223, %v569
        %585 = vst.msk [vmem:[#allocation3 + $0x70] sm:$0xff] %vm223, %v569
        %586 = vst.msk [vmem:[#allocation3 + $0x78] sm:$0xff] %vm223, %v569
        %587 = vst.msk [vmem:[#allocation3 + $0x80] sm:$0xff] %vm223, %v569
        %588 = vst.msk [vmem:[#allocation3 + $0x88] sm:$0xff] %vm223, %v569
        %589 = vst.msk [vmem:[#allocation3 + $0x90] sm:$0xff] %vm223, %v569
        %590 = vst.msk [vmem:[#allocation3 + $0x98] sm:$0xff] %vm223, %v569
        %591 = vst.msk [vmem:[#allocation3 + $0xa0] sm:$0xff] %vm223, %v569
        %592 = vst.msk [vmem:[#allocation3 + $0xa8] sm:$0xff] %vm223, %v569
        %593 = vst.msk [vmem:[#allocation3 + $0xb0] sm:$0xff] %vm223, %v569
        %594 = vst.msk [vmem:[#allocation3 + $0xb8] sm:$0xff] %vm223, %v569
        %595 = vst.msk [vmem:[#allocation3 + $0xc0] sm:$0xff] %vm223, %v569
        %596 = vst.msk [vmem:[#allocation3 + $0xc8] sm:$0xff] %vm223, %v569
        %597 = vst.msk [vmem:[#allocation3 + $0xd0] sm:$0xff] %vm223, %v569
        %598 = vst.msk [vmem:[#allocation3 + $0xd8] sm:$0xff] %vm223, %v569
        %599 = vst.msk [vmem:[#allocation3 + $0xe0] sm:$0xff] %vm223, %v569
        %600 = vst.msk [vmem:[#allocation3 + $0xe8] sm:$0xff] %vm223, %v569
        %601 = vst.msk [vmem:[#allocation3 + $0xf0] sm:$0xff] %vm223, %v569
        %602 = vst.msk [vmem:[#allocation3 + $0xf8] sm:$0xff] %vm223, %v569
        loop: start=0, step=1, limit=7
        $region41: #{ms_block.1} parent=39 // loop_pre_header
          _
        $region42: #{ms_block.1} parent=39 // loop_header
          %s604 = sphi 0, %s608
          %p605 = scmp.ge.s32.totalorder %s604, 7
        $region43: #{ms_block.1} parent=39 // loop_header_branch
          %607 = sbr.rel (%p605) target = $region47
        $region44: #{ms_block.1} parent=39 // loop_body
          %s609 = smul.u32 %s604, 24
          %s610 = scalar_lea.vmem [#allocation2], %s609
          %v611 = vld [vmem:[%s610] sm:$0xff]
          %v612 = vld [vmem:[%s610 + $0x8] sm:$0xff]
          %v613 = vld [vmem:[%s610 + $0x18] sm:$0xff]
          %v614 = vld [vmem:[%s610 + $0x20] sm:$0xff]
          %v615 = vld [vmem:[%s610 + $0x30] sm:$0xff]
          %v616 = vld [vmem:[%s610 + $0x38] sm:$0xff]
          %v617 = vld [vmem:[%s610 + $0x48] sm:$0xff]
          %v618 = vld [vmem:[%s610 + $0x50] sm:$0xff]
          %v619 = vld [vmem:[%s610 + $0x60] sm:$0xff]
          %v620 = vld [vmem:[%s610 + $0x68] sm:$0xff]
          %v621 = vld [vmem:[%s610 + $0x78] sm:$0xff]
          %v622 = vld [vmem:[%s610 + $0x80] sm:$0xff]
          %v623 = vld [vmem:[%s610 + $0x90] sm:$0xff]
          %v624 = vld [vmem:[%s610 + $0x98] sm:$0xff]
          %v625 = vld [vmem:[%s610 + $0xa8] sm:$0xff]
          %v626 = vld [vmem:[%s610 + $0xb0] sm:$0xff]
          %v627 = vld [vmem:[%s610 + $0xc0] sm:$0xff]
          %v628 = vld [vmem:[%s610 + $0xc8] sm:$0xff]
          %v629 = vld [vmem:[%s610 + $0xd8] sm:$0xff]
          %v630 = vld [vmem:[%s610 + $0xe0] sm:$0xff]
          %v631 = vld [vmem:[%s610 + $0xf0] sm:$0xff]
          %v632 = vld [vmem:[%s610 + $0xf8] sm:$0xff]
          %v633 = vld [vmem:[%s610 + $0x108] sm:$0xff]
          %v634 = vld [vmem:[%s610 + $0x110] sm:$0xff]
          %v635 = vld [vmem:[%s610 + $0x120] sm:$0xff]
          %v636 = vld [vmem:[%s610 + $0x128] sm:$0xff]
          %v637 = vld [vmem:[%s610 + $0x138] sm:$0xff]
          %v638 = vld [vmem:[%s610 + $0x140] sm:$0xff]
          %v639 = vld [vmem:[%s610 + $0x150] sm:$0xff]
          %v640 = vld [vmem:[%s610 + $0x158] sm:$0xff]
          %v641 = vld [vmem:[%s610 + $0x168] sm:$0xff]
          %v642 = vld [vmem:[%s610 + $0x170] sm:$0xff]
          %s643 = smul.u32 %s604, 7
          %s644 = smul.u32 %s643, 64
          %s645 = scalar_lea.vmem %s3, %s644
          %v646 = vld [vmem:[%s645] sm:$0xff]
          %v647 = vld [vmem:[%s645 + $0x8] sm:$0xff]
          %v648 = vld [vmem:[%s645 + $0x10] sm:$0xff]
          %v649 = vld [vmem:[%s645 + $0x18] sm:$0xff]
          %v650 = vld [vmem:[%s645 + $0x20] sm:$0xff]
          %v651 = vld [vmem:[%s645 + $0x28] sm:$0xff]
          %v652 = vld [vmem:[%s645 + $0x30] sm:$0xff]
          %v653 = vld [vmem:[%s645 + $0x38] sm:$0xff]
          %v654 = vld [vmem:[%s610 + $0x1] sm:$0xff]
          %v655 = vld [vmem:[%s610 + $0x9] sm:$0xff]
          %v656 = vld [vmem:[%s610 + $0x19] sm:$0xff]
          %v657 = vld [vmem:[%s610 + $0x21] sm:$0xff]
          %v658 = vld [vmem:[%s610 + $0x31] sm:$0xff]
          %v659 = vld [vmem:[%s610 + $0x39] sm:$0xff]
          %v660 = vld [vmem:[%s610 + $0x49] sm:$0xff]
          %v661 = vld [vmem:[%s610 + $0x51] sm:$0xff]
          %v662 = vld [vmem:[%s610 + $0x61] sm:$0xff]
          %v663 = vld [vmem:[%s610 + $0x69] sm:$0xff]
          %v664 = vld [vmem:[%s610 + $0x79] sm:$0xff]
          %v665 = vld [vmem:[%s610 + $0x81] sm:$0xff]
          %v666 = vld [vmem:[%s610 + $0x91] sm:$0xff]
          %v667 = vld [vmem:[%s610 + $0x99] sm:$0xff]
          %v668 = vld [vmem:[%s610 + $0xa9] sm:$0xff]
          %v669 = vld [vmem:[%s610 + $0xb1] sm:$0xff]
          %v670 = vld [vmem:[%s610 + $0xc1] sm:$0xff]
          %v671 = vld [vmem:[%s610 + $0xc9] sm:$0xff]
          %v672 = vld [vmem:[%s610 + $0xd9] sm:$0xff]
          %v673 = vld [vmem:[%s610 + $0xe1] sm:$0xff]
          %v674 = vld [vmem:[%s610 + $0xf1] sm:$0xff]
          %v675 = vld [vmem:[%s610 + $0xf9] sm:$0xff]
          %v676 = vld [vmem:[%s610 + $0x109] sm:$0xff]
          %v677 = vld [vmem:[%s610 + $0x111] sm:$0xff]
          %v678 = vld [vmem:[%s610 + $0x121] sm:$0xff]
          %v679 = vld [vmem:[%s610 + $0x129] sm:$0xff]
          %v680 = vld [vmem:[%s610 + $0x139] sm:$0xff]
          %v681 = vld [vmem:[%s610 + $0x141] sm:$0xff]
          %v682 = vld [vmem:[%s610 + $0x151] sm:$0xff]
          %v683 = vld [vmem:[%s610 + $0x159] sm:$0xff]
          %v684 = vld [vmem:[%s610 + $0x169] sm:$0xff]
          %v685 = vld [vmem:[%s610 + $0x171] sm:$0xff]
          %s686 = sadd.s32 %s643, 1
          %s687 = smul.u32 %s686, 64
          %s688 = scalar_lea.vmem %s3, %s687
          %v689 = vld [vmem:[%s688] sm:$0xff]
          %v690 = vld [vmem:[%s688 + $0x8] sm:$0xff]
          %v691 = vld [vmem:[%s688 + $0x10] sm:$0xff]
          %v692 = vld [vmem:[%s688 + $0x18] sm:$0xff]
          %v693 = vld [vmem:[%s688 + $0x20] sm:$0xff]
          %v694 = vld [vmem:[%s688 + $0x28] sm:$0xff]
          %v695 = vld [vmem:[%s688 + $0x30] sm:$0xff]
          %v696 = vld [vmem:[%s688 + $0x38] sm:$0xff]
          %v698 = vsel %vm223, %v654, 0
          %v701 = vsel %vm223, %v655, 0
          %v704 = vsel %vm223, %v656, 0
          %v707 = vsel %vm223, %v657, 0
          %v710 = vsel %vm223, %v658, 0
          %v713 = vsel %vm223, %v659, 0
          %v716 = vsel %vm223, %v660, 0
          %v719 = vsel %vm223, %v661, 0
          %v722 = vsel %vm223, %v662, 0
          %v725 = vsel %vm223, %v663, 0
          %v728 = vsel %vm223, %v664, 0
          %v731 = vsel %vm223, %v665, 0
          %v734 = vsel %vm223, %v666, 0
          %v737 = vsel %vm223, %v667, 0
          %v740 = vsel %vm223, %v668, 0
          %v743 = vsel %vm223, %v669, 0
          %v746 = vsel %vm223, %v670, 0
          %v749 = vsel %vm223, %v671, 0
          %v752 = vsel %vm223, %v672, 0
          %v755 = vsel %vm223, %v673, 0
          %v758 = vsel %vm223, %v674, 0
          %v761 = vsel %vm223, %v675, 0
          %v764 = vsel %vm223, %v676, 0
          %v767 = vsel %vm223, %v677, 0
          %v770 = vsel %vm223, %v678, 0
          %v773 = vsel %vm223, %v679, 0
          %v776 = vsel %vm223, %v680, 0
          %v779 = vsel %vm223, %v681, 0
          %v782 = vsel %vm223, %v682, 0
          %v785 = vsel %vm223, %v683, 0
          %v788 = vsel %vm223, %v684, 0
          %v791 = vsel %vm223, %v685, 0
          %793 = vmatpush.msra.mxu0 0.0
          %794 = vmatpush.msra.mxu0 0.0
          %795 = vmatpush.msra.mxu0 0.0
          %796 = vmatpush.msra.mxu0 0.0
          %797 = vmatpush.msra.mxu0 0.0
          %798 = vmatpush.msra.mxu0 0.0
          %799 = vmatpush.msra.mxu0 0.0
          %800 = vmatpush.msra.mxu0 0.0
          %801 = vmatpush.msra.mxu0 %v696
          %802 = vmatpush.msra.mxu0 %v695
          %803 = vmatpush.msra.mxu0 %v694
          %804 = vmatpush.msra.mxu0 %v693
          %805 = vmatpush.msra.mxu0 %v692
          %806 = vmatpush.msra.mxu0 %v691
          %807 = vmatpush.msra.mxu0 %v690
          %808 = vmatpush.msra.mxu0 %v689
          %809 = vmatmul.f32.gmra.mxu0 %v698
          %v810 = vpop.f32.mrf.mxu0
          %v811 = vadd.f32 0.0, %v810
          %812 = vmatmul.f32.gmra.mxu0 %v701
          %v813 = vpop.f32.mrf.mxu0
          %v814 = vadd.f32 0.0, %v813
          %815 = vmatmul.f32.gmra.mxu0 %v704
          %v816 = vpop.f32.mrf.mxu0
          %v817 = vadd.f32 0.0, %v816
          %818 = vmatmul.f32.gmra.mxu0 %v707
          %v819 = vpop.f32.mrf.mxu0
          %v820 = vadd.f32 0.0, %v819
          %821 = vmatmul.f32.gmra.mxu0 %v710
          %v822 = vpop.f32.mrf.mxu0
          %v823 = vadd.f32 0.0, %v822
          %824 = vmatmul.f32.gmra.mxu0 %v713
          %v825 = vpop.f32.mrf.mxu0
          %v826 = vadd.f32 0.0, %v825
          %827 = vmatmul.f32.gmra.mxu0 %v716
          %v828 = vpop.f32.mrf.mxu0
          %v829 = vadd.f32 0.0, %v828
          %830 = vmatmul.f32.gmra.mxu0 %v719
          %v831 = vpop.f32.mrf.mxu0
          %v832 = vadd.f32 0.0, %v831
          %833 = vmatmul.f32.gmra.mxu0 %v722
          %v834 = vpop.f32.mrf.mxu0
          %v835 = vadd.f32 0.0, %v834
          %836 = vmatmul.f32.gmra.mxu0 %v725
          %v837 = vpop.f32.mrf.mxu0
          %v838 = vadd.f32 0.0, %v837
          %839 = vmatmul.f32.gmra.mxu0 %v728
          %v840 = vpop.f32.mrf.mxu0
          %v841 = vadd.f32 0.0, %v840
          %842 = vmatmul.f32.gmra.mxu0 %v731
          %v843 = vpop.f32.mrf.mxu0
          %v844 = vadd.f32 0.0, %v843
          %845 = vmatmul.f32.gmra.mxu0 %v734
          %v846 = vpop.f32.mrf.mxu0
          %v847 = vadd.f32 0.0, %v846
          %848 = vmatmul.f32.gmra.mxu0 %v737
          %v849 = vpop.f32.mrf.mxu0
          %v850 = vadd.f32 0.0, %v849
          %851 = vmatmul.f32.gmra.mxu0 %v740
          %v852 = vpop.f32.mrf.mxu0
          %v853 = vadd.f32 0.0, %v852
          %854 = vmatmul.f32.gmra.mxu0 %v743
          %v855 = vpop.f32.mrf.mxu0
          %v856 = vadd.f32 0.0, %v855
          %857 = vmatmul.f32.gmra.mxu0 %v746
          %v858 = vpop.f32.mrf.mxu0
          %v859 = vadd.f32 0.0, %v858
          %860 = vmatmul.f32.gmra.mxu0 %v749
          %v861 = vpop.f32.mrf.mxu0
          %v862 = vadd.f32 0.0, %v861
          %863 = vmatmul.f32.gmra.mxu0 %v752
          %v864 = vpop.f32.mrf.mxu0
          %v865 = vadd.f32 0.0, %v864
          %866 = vmatmul.f32.gmra.mxu0 %v755
          %v867 = vpop.f32.mrf.mxu0
          %v868 = vadd.f32 0.0, %v867
          %869 = vmatmul.f32.gmra.mxu0 %v758
          %v870 = vpop.f32.mrf.mxu0
          %v871 = vadd.f32 0.0, %v870
          %872 = vmatmul.f32.gmra.mxu0 %v761
          %v873 = vpop.f32.mrf.mxu0
          %v874 = vadd.f32 0.0, %v873
          %875 = vmatmul.f32.gmra.mxu0 %v764
          %v876 = vpop.f32.mrf.mxu0
          %v877 = vadd.f32 0.0, %v876
          %878 = vmatmul.f32.gmra.mxu0 %v767
          %v879 = vpop.f32.mrf.mxu0
          %v880 = vadd.f32 0.0, %v879
          %881 = vmatmul.f32.gmra.mxu0 %v770
          %v882 = vpop.f32.mrf.mxu0
          %v883 = vadd.f32 0.0, %v882
          %884 = vmatmul.f32.gmra.mxu0 %v773
          %v885 = vpop.f32.mrf.mxu0
          %v886 = vadd.f32 0.0, %v885
          %887 = vmatmul.f32.gmra.mxu0 %v776
          %v888 = vpop.f32.mrf.mxu0
          %v889 = vadd.f32 0.0, %v888
          %890 = vmatmul.f32.gmra.mxu0 %v779
          %v891 = vpop.f32.mrf.mxu0
          %v892 = vadd.f32 0.0, %v891
          %893 = vmatmul.f32.gmra.mxu0 %v782
          %v894 = vpop.f32.mrf.mxu0
          %v895 = vadd.f32 0.0, %v894
          %896 = vmatmul.f32.gmra.mxu0 %v785
          %v897 = vpop.f32.mrf.mxu0
          %v898 = vadd.f32 0.0, %v897
          %899 = vmatmul.f32.gmra.mxu0 %v788
          %v900 = vpop.f32.mrf.mxu0
          %v901 = vadd.f32 0.0, %v900
          %902 = vmatmul.f32.gmra.mxu0 %v791
          %v903 = vpop.f32.mrf.mxu0
          %v904 = vadd.f32 0.0, %v903
          %905 = vdwg.mxu0
          %v907 = vsel %vm223, %v611, 0
          %v910 = vsel %vm223, %v612, 0
          %v913 = vsel %vm223, %v613, 0
          %v916 = vsel %vm223, %v614, 0
          %v919 = vsel %vm223, %v615, 0
          %v922 = vsel %vm223, %v616, 0
          %v925 = vsel %vm223, %v617, 0
          %v928 = vsel %vm223, %v618, 0
          %v931 = vsel %vm223, %v619, 0
          %v934 = vsel %vm223, %v620, 0
          %v937 = vsel %vm223, %v621, 0
          %v940 = vsel %vm223, %v622, 0
          %v943 = vsel %vm223, %v623, 0
          %v946 = vsel %vm223, %v624, 0
          %v949 = vsel %vm223, %v625, 0
          %v952 = vsel %vm223, %v626, 0
          %v955 = vsel %vm223, %v627, 0
          %v958 = vsel %vm223, %v628, 0
          %v961 = vsel %vm223, %v629, 0
          %v964 = vsel %vm223, %v630, 0
          %v967 = vsel %vm223, %v631, 0
          %v970 = vsel %vm223, %v632, 0
          %v973 = vsel %vm223, %v633, 0
          %v976 = vsel %vm223, %v634, 0
          %v979 = vsel %vm223, %v635, 0
          %v982 = vsel %vm223, %v636, 0
          %v985 = vsel %vm223, %v637, 0
          %v988 = vsel %vm223, %v638, 0
          %v991 = vsel %vm223, %v639, 0
          %v994 = vsel %vm223, %v640, 0
          %v997 = vsel %vm223, %v641, 0
          %v1000 = vsel %vm223, %v642, 0
          %1002 = vmatpush.msra.mxu0 0.0
          %1003 = vmatpush.msra.mxu0 0.0
          %1004 = vmatpush.msra.mxu0 0.0
          %1005 = vmatpush.msra.mxu0 0.0
          %1006 = vmatpush.msra.mxu0 0.0
          %1007 = vmatpush.msra.mxu0 0.0
          %1008 = vmatpush.msra.mxu0 0.0
          %1009 = vmatpush.msra.mxu0 0.0
          %1010 = vmatpush.msra.mxu0 %v653
          %1011 = vmatpush.msra.mxu0 %v652
          %1012 = vmatpush.msra.mxu0 %v651
          %1013 = vmatpush.msra.mxu0 %v650
          %1014 = vmatpush.msra.mxu0 %v649
          %1015 = vmatpush.msra.mxu0 %v648
          %1016 = vmatpush.msra.mxu0 %v647
          %1017 = vmatpush.msra.mxu0 %v646
          %1018 = vmatmul.f32.gmra.mxu0 %v907
          %v1019 = vpop.f32.mrf.mxu0
          %v1020 = vadd.f32 %v811, %v1019
          %1021 = vmatmul.f32.gmra.mxu0 %v910
          %v1022 = vpop.f32.mrf.mxu0
          %v1023 = vadd.f32 %v814, %v1022
          %1024 = vmatmul.f32.gmra.mxu0 %v913
          %v1025 = vpop.f32.mrf.mxu0
          %v1026 = vadd.f32 %v817, %v1025
          %1027 = vmatmul.f32.gmra.mxu0 %v916
          %v1028 = vpop.f32.mrf.mxu0
          %v1029 = vadd.f32 %v820, %v1028
          %1030 = vmatmul.f32.gmra.mxu0 %v919
          %v1031 = vpop.f32.mrf.mxu0
          %v1032 = vadd.f32 %v823, %v1031
          %1033 = vmatmul.f32.gmra.mxu0 %v922
          %v1034 = vpop.f32.mrf.mxu0
          %v1035 = vadd.f32 %v826, %v1034
          %1036 = vmatmul.f32.gmra.mxu0 %v925
          %v1037 = vpop.f32.mrf.mxu0
          %v1038 = vadd.f32 %v829, %v1037
          %1039 = vmatmul.f32.gmra.mxu0 %v928
          %v1040 = vpop.f32.mrf.mxu0
          %v1041 = vadd.f32 %v832, %v1040
          %1042 = vmatmul.f32.gmra.mxu0 %v931
          %v1043 = vpop.f32.mrf.mxu0
          %v1044 = vadd.f32 %v835, %v1043
          %1045 = vmatmul.f32.gmra.mxu0 %v934
          %v1046 = vpop.f32.mrf.mxu0
          %v1047 = vadd.f32 %v838, %v1046
          %1048 = vmatmul.f32.gmra.mxu0 %v937
          %v1049 = vpop.f32.mrf.mxu0
          %v1050 = vadd.f32 %v841, %v1049
          %1051 = vmatmul.f32.gmra.mxu0 %v940
          %v1052 = vpop.f32.mrf.mxu0
          %v1053 = vadd.f32 %v844, %v1052
          %1054 = vmatmul.f32.gmra.mxu0 %v943
          %v1055 = vpop.f32.mrf.mxu0
          %v1056 = vadd.f32 %v847, %v1055
          %1057 = vmatmul.f32.gmra.mxu0 %v946
          %v1058 = vpop.f32.mrf.mxu0
          %v1059 = vadd.f32 %v850, %v1058
          %1060 = vmatmul.f32.gmra.mxu0 %v949
          %v1061 = vpop.f32.mrf.mxu0
          %v1062 = vadd.f32 %v853, %v1061
          %1063 = vmatmul.f32.gmra.mxu0 %v952
          %v1064 = vpop.f32.mrf.mxu0
          %v1065 = vadd.f32 %v856, %v1064
          %1066 = vmatmul.f32.gmra.mxu0 %v955
          %v1067 = vpop.f32.mrf.mxu0
          %v1068 = vadd.f32 %v859, %v1067
          %1069 = vmatmul.f32.gmra.mxu0 %v958
          %v1070 = vpop.f32.mrf.mxu0
          %v1071 = vadd.f32 %v862, %v1070
          %1072 = vmatmul.f32.gmra.mxu0 %v961
          %v1073 = vpop.f32.mrf.mxu0
          %v1074 = vadd.f32 %v865, %v1073
          %1075 = vmatmul.f32.gmra.mxu0 %v964
          %v1076 = vpop.f32.mrf.mxu0
          %v1077 = vadd.f32 %v868, %v1076
          %1078 = vmatmul.f32.gmra.mxu0 %v967
          %v1079 = vpop.f32.mrf.mxu0
          %v1080 = vadd.f32 %v871, %v1079
          %1081 = vmatmul.f32.gmra.mxu0 %v970
          %v1082 = vpop.f32.mrf.mxu0
          %v1083 = vadd.f32 %v874, %v1082
          %1084 = vmatmul.f32.gmra.mxu0 %v973
          %v1085 = vpop.f32.mrf.mxu0
          %v1086 = vadd.f32 %v877, %v1085
          %1087 = vmatmul.f32.gmra.mxu0 %v976
          %v1088 = vpop.f32.mrf.mxu0
          %v1089 = vadd.f32 %v880, %v1088
          %1090 = vmatmul.f32.gmra.mxu0 %v979
          %v1091 = vpop.f32.mrf.mxu0
          %v1092 = vadd.f32 %v883, %v1091
          %1093 = vmatmul.f32.gmra.mxu0 %v982
          %v1094 = vpop.f32.mrf.mxu0
          %v1095 = vadd.f32 %v886, %v1094
          %1096 = vmatmul.f32.gmra.mxu0 %v985
          %v1097 = vpop.f32.mrf.mxu0
          %v1098 = vadd.f32 %v889, %v1097
          %1099 = vmatmul.f32.gmra.mxu0 %v988
          %v1100 = vpop.f32.mrf.mxu0
          %v1101 = vadd.f32 %v892, %v1100
          %1102 = vmatmul.f32.gmra.mxu0 %v991
          %v1103 = vpop.f32.mrf.mxu0
          %v1104 = vadd.f32 %v895, %v1103
          %1105 = vmatmul.f32.gmra.mxu0 %v994
          %v1106 = vpop.f32.mrf.mxu0
          %v1107 = vadd.f32 %v898, %v1106
          %1108 = vmatmul.f32.gmra.mxu0 %v997
          %v1109 = vpop.f32.mrf.mxu0
          %v1110 = vadd.f32 %v901, %v1109
          %1111 = vmatmul.f32.gmra.mxu0 %v1000
          %v1112 = vpop.f32.mrf.mxu0
          %v1113 = vadd.f32 %v904, %v1112
          %1114 = vdwg.mxu0
          %v1115 = vld [vmem:[%s610 + $0x2] sm:$0xff]
          %v1116 = vld [vmem:[%s610 + $0xa] sm:$0xff]
          %v1117 = vld [vmem:[%s610 + $0x1a] sm:$0xff]
          %v1118 = vld [vmem:[%s610 + $0x22] sm:$0xff]
          %v1119 = vld [vmem:[%s610 + $0x32] sm:$0xff]
          %v1120 = vld [vmem:[%s610 + $0x3a] sm:$0xff]
          %v1121 = vld [vmem:[%s610 + $0x4a] sm:$0xff]
          %v1122 = vld [vmem:[%s610 + $0x52] sm:$0xff]
          %v1123 = vld [vmem:[%s610 + $0x62] sm:$0xff]
          %v1124 = vld [vmem:[%s610 + $0x6a] sm:$0xff]
          %v1125 = vld [vmem:[%s610 + $0x7a] sm:$0xff]
          %v1126 = vld [vmem:[%s610 + $0x82] sm:$0xff]
          %v1127 = vld [vmem:[%s610 + $0x92] sm:$0xff]
          %v1128 = vld [vmem:[%s610 + $0x9a] sm:$0xff]
          %v1129 = vld [vmem:[%s610 + $0xaa] sm:$0xff]
          %v1130 = vld [vmem:[%s610 + $0xb2] sm:$0xff]
          %v1131 = vld [vmem:[%s610 + $0xc2] sm:$0xff]
          %v1132 = vld [vmem:[%s610 + $0xca] sm:$0xff]
          %v1133 = vld [vmem:[%s610 + $0xda] sm:$0xff]
          %v1134 = vld [vmem:[%s610 + $0xe2] sm:$0xff]
          %v1135 = vld [vmem:[%s610 + $0xf2] sm:$0xff]
          %v1136 = vld [vmem:[%s610 + $0xfa] sm:$0xff]
          %v1137 = vld [vmem:[%s610 + $0x10a] sm:$0xff]
          %v1138 = vld [vmem:[%s610 + $0x112] sm:$0xff]
          %v1139 = vld [vmem:[%s610 + $0x122] sm:$0xff]
          %v1140 = vld [vmem:[%s610 + $0x12a] sm:$0xff]
          %v1141 = vld [vmem:[%s610 + $0x13a] sm:$0xff]
          %v1142 = vld [vmem:[%s610 + $0x142] sm:$0xff]
          %v1143 = vld [vmem:[%s610 + $0x152] sm:$0xff]
          %v1144 = vld [vmem:[%s610 + $0x15a] sm:$0xff]
          %v1145 = vld [vmem:[%s610 + $0x16a] sm:$0xff]
          %v1146 = vld [vmem:[%s610 + $0x172] sm:$0xff]
          %s1147 = sadd.s32 %s643, 2
          %s1148 = smul.u32 %s1147, 64
          %s1149 = scalar_lea.vmem %s3, %s1148
          %v1150 = vld [vmem:[%s1149] sm:$0xff]
          %v1151 = vld [vmem:[%s1149 + $0x8] sm:$0xff]
          %v1152 = vld [vmem:[%s1149 + $0x10] sm:$0xff]
          %v1153 = vld [vmem:[%s1149 + $0x18] sm:$0xff]
          %v1154 = vld [vmem:[%s1149 + $0x20] sm:$0xff]
          %v1155 = vld [vmem:[%s1149 + $0x28] sm:$0xff]
          %v1156 = vld [vmem:[%s1149 + $0x30] sm:$0xff]
          %v1157 = vld [vmem:[%s1149 + $0x38] sm:$0xff]
          %v1159 = vsel %vm223, %v1115, 0
          %v1162 = vsel %vm223, %v1116, 0
          %v1165 = vsel %vm223, %v1117, 0
          %v1168 = vsel %vm223, %v1118, 0
          %v1171 = vsel %vm223, %v1119, 0
          %v1174 = vsel %vm223, %v1120, 0
          %v1177 = vsel %vm223, %v1121, 0
          %v1180 = vsel %vm223, %v1122, 0
          %v1183 = vsel %vm223, %v1123, 0
          %v1186 = vsel %vm223, %v1124, 0
          %v1189 = vsel %vm223, %v1125, 0
          %v1192 = vsel %vm223, %v1126, 0
          %v1195 = vsel %vm223, %v1127, 0
          %v1198 = vsel %vm223, %v1128, 0
          %v1201 = vsel %vm223, %v1129, 0
          %v1204 = vsel %vm223, %v1130, 0
          %v1207 = vsel %vm223, %v1131, 0
          %v1210 = vsel %vm223, %v1132, 0
          %v1213 = vsel %vm223, %v1133, 0
          %v1216 = vsel %vm223, %v1134, 0
          %v1219 = vsel %vm223, %v1135, 0
          %v1222 = vsel %vm223, %v1136, 0
          %v1225 = vsel %vm223, %v1137, 0
          %v1228 = vsel %vm223, %v1138, 0
          %v1231 = vsel %vm223, %v1139, 0
          %v1234 = vsel %vm223, %v1140, 0
          %v1237 = vsel %vm223, %v1141, 0
          %v1240 = vsel %vm223, %v1142, 0
          %v1243 = vsel %vm223, %v1143, 0
          %v1246 = vsel %vm223, %v1144, 0
          %v1249 = vsel %vm223, %v1145, 0
          %v1252 = vsel %vm223, %v1146, 0
          %1254 = vmatpush.msra.mxu0 0.0
          %1255 = vmatpush.msra.mxu0 0.0
          %1256 = vmatpush.msra.mxu0 0.0
          %1257 = vmatpush.msra.mxu0 0.0
          %1258 = vmatpush.msra.mxu0 0.0
          %1259 = vmatpush.msra.mxu0 0.0
          %1260 = vmatpush.msra.mxu0 0.0
          %1261 = vmatpush.msra.mxu0 0.0
          %1262 = vmatpush.msra.mxu0 %v1157
          %1263 = vmatpush.msra.mxu0 %v1156
          %1264 = vmatpush.msra.mxu0 %v1155
          %1265 = vmatpush.msra.mxu0 %v1154
          %1266 = vmatpush.msra.mxu0 %v1153
          %1267 = vmatpush.msra.mxu0 %v1152
          %1268 = vmatpush.msra.mxu0 %v1151
          %1269 = vmatpush.msra.mxu0 %v1150
          %1270 = vmatmul.f32.gmra.mxu0 %v1159
          %v1271 = vpop.f32.mrf.mxu0
          %v1272 = vadd.f32 0.0, %v1271
          %1273 = vmatmul.f32.gmra.mxu0 %v1162
          %v1274 = vpop.f32.mrf.mxu0
          %v1275 = vadd.f32 0.0, %v1274
          %1276 = vmatmul.f32.gmra.mxu0 %v1165
          %v1277 = vpop.f32.mrf.mxu0
          %v1278 = vadd.f32 0.0, %v1277
          %1279 = vmatmul.f32.gmra.mxu0 %v1168
          %v1280 = vpop.f32.mrf.mxu0
          %v1281 = vadd.f32 0.0, %v1280
          %1282 = vmatmul.f32.gmra.mxu0 %v1171
          %v1283 = vpop.f32.mrf.mxu0
          %v1284 = vadd.f32 0.0, %v1283
          %1285 = vmatmul.f32.gmra.mxu0 %v1174
          %v1286 = vpop.f32.mrf.mxu0
          %v1287 = vadd.f32 0.0, %v1286
          %1288 = vmatmul.f32.gmra.mxu0 %v1177
          %v1289 = vpop.f32.mrf.mxu0
          %v1290 = vadd.f32 0.0, %v1289
          %1291 = vmatmul.f32.gmra.mxu0 %v1180
          %v1292 = vpop.f32.mrf.mxu0
          %v1293 = vadd.f32 0.0, %v1292
          %1294 = vmatmul.f32.gmra.mxu0 %v1183
          %v1295 = vpop.f32.mrf.mxu0
          %v1296 = vadd.f32 0.0, %v1295
          %1297 = vmatmul.f32.gmra.mxu0 %v1186
          %v1298 = vpop.f32.mrf.mxu0
          %v1299 = vadd.f32 0.0, %v1298
          %1300 = vmatmul.f32.gmra.mxu0 %v1189
          %v1301 = vpop.f32.mrf.mxu0
          %v1302 = vadd.f32 0.0, %v1301
          %1303 = vmatmul.f32.gmra.mxu0 %v1192
          %v1304 = vpop.f32.mrf.mxu0
          %v1305 = vadd.f32 0.0, %v1304
          %1306 = vmatmul.f32.gmra.mxu0 %v1195
          %v1307 = vpop.f32.mrf.mxu0
          %v1308 = vadd.f32 0.0, %v1307
          %1309 = vmatmul.f32.gmra.mxu0 %v1198
          %v1310 = vpop.f32.mrf.mxu0
          %v1311 = vadd.f32 0.0, %v1310
          %1312 = vmatmul.f32.gmra.mxu0 %v1201
          %v1313 = vpop.f32.mrf.mxu0
          %v1314 = vadd.f32 0.0, %v1313
          %1315 = vmatmul.f32.gmra.mxu0 %v1204
          %v1316 = vpop.f32.mrf.mxu0
          %v1317 = vadd.f32 0.0, %v1316
          %1318 = vmatmul.f32.gmra.mxu0 %v1207
          %v1319 = vpop.f32.mrf.mxu0
          %v1320 = vadd.f32 0.0, %v1319
          %1321 = vmatmul.f32.gmra.mxu0 %v1210
          %v1322 = vpop.f32.mrf.mxu0
          %v1323 = vadd.f32 0.0, %v1322
          %1324 = vmatmul.f32.gmra.mxu0 %v1213
          %v1325 = vpop.f32.mrf.mxu0
          %v1326 = vadd.f32 0.0, %v1325
          %1327 = vmatmul.f32.gmra.mxu0 %v1216
          %v1328 = vpop.f32.mrf.mxu0
          %v1329 = vadd.f32 0.0, %v1328
          %1330 = vmatmul.f32.gmra.mxu0 %v1219
          %v1331 = vpop.f32.mrf.mxu0
          %v1332 = vadd.f32 0.0, %v1331
          %1333 = vmatmul.f32.gmra.mxu0 %v1222
          %v1334 = vpop.f32.mrf.mxu0
          %v1335 = vadd.f32 0.0, %v1334
          %1336 = vmatmul.f32.gmra.mxu0 %v1225
          %v1337 = vpop.f32.mrf.mxu0
          %v1338 = vadd.f32 0.0, %v1337
          %1339 = vmatmul.f32.gmra.mxu0 %v1228
          %v1340 = vpop.f32.mrf.mxu0
          %v1341 = vadd.f32 0.0, %v1340
          %1342 = vmatmul.f32.gmra.mxu0 %v1231
          %v1343 = vpop.f32.mrf.mxu0
          %v1344 = vadd.f32 0.0, %v1343
          %1345 = vmatmul.f32.gmra.mxu0 %v1234
          %v1346 = vpop.f32.mrf.mxu0
          %v1347 = vadd.f32 0.0, %v1346
          %1348 = vmatmul.f32.gmra.mxu0 %v1237
          %v1349 = vpop.f32.mrf.mxu0
          %v1350 = vadd.f32 0.0, %v1349
          %1351 = vmatmul.f32.gmra.mxu0 %v1240
          %v1352 = vpop.f32.mrf.mxu0
          %v1353 = vadd.f32 0.0, %v1352
          %1354 = vmatmul.f32.gmra.mxu0 %v1243
          %v1355 = vpop.f32.mrf.mxu0
          %v1356 = vadd.f32 0.0, %v1355
          %1357 = vmatmul.f32.gmra.mxu0 %v1246
          %v1358 = vpop.f32.mrf.mxu0
          %v1359 = vadd.f32 0.0, %v1358
          %1360 = vmatmul.f32.gmra.mxu0 %v1249
          %v1361 = vpop.f32.mrf.mxu0
          %v1362 = vadd.f32 0.0, %v1361
          %1363 = vmatmul.f32.gmra.mxu0 %v1252
          %v1364 = vpop.f32.mrf.mxu0
          %v1365 = vadd.f32 0.0, %v1364
          %1366 = vdwg.mxu0
          %v1367 = vadd.f32 %v1020, %v1272
          %v1368 = vadd.f32 %v1023, %v1275
          %v1369 = vadd.f32 %v1026, %v1278
          %v1370 = vadd.f32 %v1029, %v1281
          %v1371 = vadd.f32 %v1032, %v1284
          %v1372 = vadd.f32 %v1035, %v1287
          %v1373 = vadd.f32 %v1038, %v1290
          %v1374 = vadd.f32 %v1041, %v1293
          %v1375 = vadd.f32 %v1044, %v1296
          %v1376 = vadd.f32 %v1047, %v1299
          %v1377 = vadd.f32 %v1050, %v1302
          %v1378 = vadd.f32 %v1053, %v1305
          %v1379 = vadd.f32 %v1056, %v1308
          %v1380 = vadd.f32 %v1059, %v1311
          %v1381 = vadd.f32 %v1062, %v1314
          %v1382 = vadd.f32 %v1065, %v1317
          %v1383 = vadd.f32 %v1068, %v1320
          %v1384 = vadd.f32 %v1071, %v1323
          %v1385 = vadd.f32 %v1074, %v1326
          %v1386 = vadd.f32 %v1077, %v1329
          %v1387 = vadd.f32 %v1080, %v1332
          %v1388 = vadd.f32 %v1083, %v1335
          %v1389 = vadd.f32 %v1086, %v1338
          %v1390 = vadd.f32 %v1089, %v1341
          %v1391 = vadd.f32 %v1092, %v1344
          %v1392 = vadd.f32 %v1095, %v1347
          %v1393 = vadd.f32 %v1098, %v1350
          %v1394 = vadd.f32 %v1101, %v1353
          %v1395 = vadd.f32 %v1104, %v1356
          %v1396 = vadd.f32 %v1107, %v1359
          %v1397 = vadd.f32 %v1110, %v1362
          %v1398 = vadd.f32 %v1113, %v1365
          %v1399 = vld [vmem:[%s610 + $0x3] sm:$0xff]
          %v1400 = vld [vmem:[%s610 + $0xb] sm:$0xff]
          %v1401 = vld [vmem:[%s610 + $0x1b] sm:$0xff]
          %v1402 = vld [vmem:[%s610 + $0x23] sm:$0xff]
          %v1403 = vld [vmem:[%s610 + $0x33] sm:$0xff]
          %v1404 = vld [vmem:[%s610 + $0x3b] sm:$0xff]
          %v1405 = vld [vmem:[%s610 + $0x4b] sm:$0xff]
          %v1406 = vld [vmem:[%s610 + $0x53] sm:$0xff]
          %v1407 = vld [vmem:[%s610 + $0x63] sm:$0xff]
          %v1408 = vld [vmem:[%s610 + $0x6b] sm:$0xff]
          %v1409 = vld [vmem:[%s610 + $0x7b] sm:$0xff]
          %v1410 = vld [vmem:[%s610 + $0x83] sm:$0xff]
          %v1411 = vld [vmem:[%s610 + $0x93] sm:$0xff]
          %v1412 = vld [vmem:[%s610 + $0x9b] sm:$0xff]
          %v1413 = vld [vmem:[%s610 + $0xab] sm:$0xff]
          %v1414 = vld [vmem:[%s610 + $0xb3] sm:$0xff]
          %v1415 = vld [vmem:[%s610 + $0xc3] sm:$0xff]
          %v1416 = vld [vmem:[%s610 + $0xcb] sm:$0xff]
          %v1417 = vld [vmem:[%s610 + $0xdb] sm:$0xff]
          %v1418 = vld [vmem:[%s610 + $0xe3] sm:$0xff]
          %v1419 = vld [vmem:[%s610 + $0xf3] sm:$0xff]
          %v1420 = vld [vmem:[%s610 + $0xfb] sm:$0xff]
          %v1421 = vld [vmem:[%s610 + $0x10b] sm:$0xff]
          %v1422 = vld [vmem:[%s610 + $0x113] sm:$0xff]
          %v1423 = vld [vmem:[%s610 + $0x123] sm:$0xff]
          %v1424 = vld [vmem:[%s610 + $0x12b] sm:$0xff]
          %v1425 = vld [vmem:[%s610 + $0x13b] sm:$0xff]
          %v1426 = vld [vmem:[%s610 + $0x143] sm:$0xff]
          %v1427 = vld [vmem:[%s610 + $0x153] sm:$0xff]
          %v1428 = vld [vmem:[%s610 + $0x15b] sm:$0xff]
          %v1429 = vld [vmem:[%s610 + $0x16b] sm:$0xff]
          %v1430 = vld [vmem:[%s610 + $0x173] sm:$0xff]
          %s1431 = sadd.s32 %s643, 3
          %s1432 = smul.u32 %s1431, 64
          %s1433 = scalar_lea.vmem %s3, %s1432
          %v1434 = vld [vmem:[%s1433] sm:$0xff]
          %v1435 = vld [vmem:[%s1433 + $0x8] sm:$0xff]
          %v1436 = vld [vmem:[%s1433 + $0x10] sm:$0xff]
          %v1437 = vld [vmem:[%s1433 + $0x18] sm:$0xff]
          %v1438 = vld [vmem:[%s1433 + $0x20] sm:$0xff]
          %v1439 = vld [vmem:[%s1433 + $0x28] sm:$0xff]
          %v1440 = vld [vmem:[%s1433 + $0x30] sm:$0xff]
          %v1441 = vld [vmem:[%s1433 + $0x38] sm:$0xff]
          %v1443 = vsel %vm223, %v1399, 0
          %v1446 = vsel %vm223, %v1400, 0
          %v1449 = vsel %vm223, %v1401, 0
          %v1452 = vsel %vm223, %v1402, 0
          %v1455 = vsel %vm223, %v1403, 0
          %v1458 = vsel %vm223, %v1404, 0
          %v1461 = vsel %vm223, %v1405, 0
          %v1464 = vsel %vm223, %v1406, 0
          %v1467 = vsel %vm223, %v1407, 0
          %v1470 = vsel %vm223, %v1408, 0
          %v1473 = vsel %vm223, %v1409, 0
          %v1476 = vsel %vm223, %v1410, 0
          %v1479 = vsel %vm223, %v1411, 0
          %v1482 = vsel %vm223, %v1412, 0
          %v1485 = vsel %vm223, %v1413, 0
          %v1488 = vsel %vm223, %v1414, 0
          %v1491 = vsel %vm223, %v1415, 0
          %v1494 = vsel %vm223, %v1416, 0
          %v1497 = vsel %vm223, %v1417, 0
          %v1500 = vsel %vm223, %v1418, 0
          %v1503 = vsel %vm223, %v1419, 0
          %v1506 = vsel %vm223, %v1420, 0
          %v1509 = vsel %vm223, %v1421, 0
          %v1512 = vsel %vm223, %v1422, 0
          %v1515 = vsel %vm223, %v1423, 0
          %v1518 = vsel %vm223, %v1424, 0
          %v1521 = vsel %vm223, %v1425, 0
          %v1524 = vsel %vm223, %v1426, 0
          %v1527 = vsel %vm223, %v1427, 0
          %v1530 = vsel %vm223, %v1428, 0
          %v1533 = vsel %vm223, %v1429, 0
          %v1536 = vsel %vm223, %v1430, 0
          %1538 = vmatpush.msra.mxu0 0.0
          %1539 = vmatpush.msra.mxu0 0.0
          %1540 = vmatpush.msra.mxu0 0.0
          %1541 = vmatpush.msra.mxu0 0.0
          %1542 = vmatpush.msra.mxu0 0.0
          %1543 = vmatpush.msra.mxu0 0.0
          %1544 = vmatpush.msra.mxu0 0.0
          %1545 = vmatpush.msra.mxu0 0.0
          %1546 = vmatpush.msra.mxu0 %v1441
          %1547 = vmatpush.msra.mxu0 %v1440
          %1548 = vmatpush.msra.mxu0 %v1439
          %1549 = vmatpush.msra.mxu0 %v1438
          %1550 = vmatpush.msra.mxu0 %v1437
          %1551 = vmatpush.msra.mxu0 %v1436
          %1552 = vmatpush.msra.mxu0 %v1435
          %1553 = vmatpush.msra.mxu0 %v1434
          %1554 = vmatmul.f32.gmra.mxu0 %v1443
          %v1555 = vpop.f32.mrf.mxu0
          %v1556 = vadd.f32 0.0, %v1555
          %1557 = vmatmul.f32.gmra.mxu0 %v1446
          %v1558 = vpop.f32.mrf.mxu0
          %v1559 = vadd.f32 0.0, %v1558
          %1560 = vmatmul.f32.gmra.mxu0 %v1449
          %v1561 = vpop.f32.mrf.mxu0
          %v1562 = vadd.f32 0.0, %v1561
          %1563 = vmatmul.f32.gmra.mxu0 %v1452
          %v1564 = vpop.f32.mrf.mxu0
          %v1565 = vadd.f32 0.0, %v1564
          %1566 = vmatmul.f32.gmra.mxu0 %v1455
          %v1567 = vpop.f32.mrf.mxu0
          %v1568 = vadd.f32 0.0, %v1567
          %1569 = vmatmul.f32.gmra.mxu0 %v1458
          %v1570 = vpop.f32.mrf.mxu0
          %v1571 = vadd.f32 0.0, %v1570
          %1572 = vmatmul.f32.gmra.mxu0 %v1461
          %v1573 = vpop.f32.mrf.mxu0
          %v1574 = vadd.f32 0.0, %v1573
          %1575 = vmatmul.f32.gmra.mxu0 %v1464
          %v1576 = vpop.f32.mrf.mxu0
          %v1577 = vadd.f32 0.0, %v1576
          %1578 = vmatmul.f32.gmra.mxu0 %v1467
          %v1579 = vpop.f32.mrf.mxu0
          %v1580 = vadd.f32 0.0, %v1579
          %1581 = vmatmul.f32.gmra.mxu0 %v1470
          %v1582 = vpop.f32.mrf.mxu0
          %v1583 = vadd.f32 0.0, %v1582
          %1584 = vmatmul.f32.gmra.mxu0 %v1473
          %v1585 = vpop.f32.mrf.mxu0
          %v1586 = vadd.f32 0.0, %v1585
          %1587 = vmatmul.f32.gmra.mxu0 %v1476
          %v1588 = vpop.f32.mrf.mxu0
          %v1589 = vadd.f32 0.0, %v1588
          %1590 = vmatmul.f32.gmra.mxu0 %v1479
          %v1591 = vpop.f32.mrf.mxu0
          %v1592 = vadd.f32 0.0, %v1591
          %1593 = vmatmul.f32.gmra.mxu0 %v1482
          %v1594 = vpop.f32.mrf.mxu0
          %v1595 = vadd.f32 0.0, %v1594
          %1596 = vmatmul.f32.gmra.mxu0 %v1485
          %v1597 = vpop.f32.mrf.mxu0
          %v1598 = vadd.f32 0.0, %v1597
          %1599 = vmatmul.f32.gmra.mxu0 %v1488
          %v1600 = vpop.f32.mrf.mxu0
          %v1601 = vadd.f32 0.0, %v1600
          %1602 = vmatmul.f32.gmra.mxu0 %v1491
          %v1603 = vpop.f32.mrf.mxu0
          %v1604 = vadd.f32 0.0, %v1603
          %1605 = vmatmul.f32.gmra.mxu0 %v1494
          %v1606 = vpop.f32.mrf.mxu0
          %v1607 = vadd.f32 0.0, %v1606
          %1608 = vmatmul.f32.gmra.mxu0 %v1497
          %v1609 = vpop.f32.mrf.mxu0
          %v1610 = vadd.f32 0.0, %v1609
          %1611 = vmatmul.f32.gmra.mxu0 %v1500
          %v1612 = vpop.f32.mrf.mxu0
          %v1613 = vadd.f32 0.0, %v1612
          %1614 = vmatmul.f32.gmra.mxu0 %v1503
          %v1615 = vpop.f32.mrf.mxu0
          %v1616 = vadd.f32 0.0, %v1615
          %1617 = vmatmul.f32.gmra.mxu0 %v1506
          %v1618 = vpop.f32.mrf.mxu0
          %v1619 = vadd.f32 0.0, %v1618
          %1620 = vmatmul.f32.gmra.mxu0 %v1509
          %v1621 = vpop.f32.mrf.mxu0
          %v1622 = vadd.f32 0.0, %v1621
          %1623 = vmatmul.f32.gmra.mxu0 %v1512
          %v1624 = vpop.f32.mrf.mxu0
          %v1625 = vadd.f32 0.0, %v1624
          %1626 = vmatmul.f32.gmra.mxu0 %v1515
          %v1627 = vpop.f32.mrf.mxu0
          %v1628 = vadd.f32 0.0, %v1627
          %1629 = vmatmul.f32.gmra.mxu0 %v1518
          %v1630 = vpop.f32.mrf.mxu0
          %v1631 = vadd.f32 0.0, %v1630
          %1632 = vmatmul.f32.gmra.mxu0 %v1521
          %v1633 = vpop.f32.mrf.mxu0
          %v1634 = vadd.f32 0.0, %v1633
          %1635 = vmatmul.f32.gmra.mxu0 %v1524
          %v1636 = vpop.f32.mrf.mxu0
          %v1637 = vadd.f32 0.0, %v1636
          %1638 = vmatmul.f32.gmra.mxu0 %v1527
          %v1639 = vpop.f32.mrf.mxu0
          %v1640 = vadd.f32 0.0, %v1639
          %1641 = vmatmul.f32.gmra.mxu0 %v1530
          %v1642 = vpop.f32.mrf.mxu0
          %v1643 = vadd.f32 0.0, %v1642
          %1644 = vmatmul.f32.gmra.mxu0 %v1533
          %v1645 = vpop.f32.mrf.mxu0
          %v1646 = vadd.f32 0.0, %v1645
          %1647 = vmatmul.f32.gmra.mxu0 %v1536
          %v1648 = vpop.f32.mrf.mxu0
          %v1649 = vadd.f32 0.0, %v1648
          %1650 = vdwg.mxu0
          %v1651 = vadd.f32 %v1367, %v1556
          %v1652 = vadd.f32 %v1368, %v1559
          %v1653 = vadd.f32 %v1369, %v1562
          %v1654 = vadd.f32 %v1370, %v1565
          %v1655 = vadd.f32 %v1371, %v1568
          %v1656 = vadd.f32 %v1372, %v1571
          %v1657 = vadd.f32 %v1373, %v1574
          %v1658 = vadd.f32 %v1374, %v1577
          %v1659 = vadd.f32 %v1375, %v1580
          %v1660 = vadd.f32 %v1376, %v1583
          %v1661 = vadd.f32 %v1377, %v1586
          %v1662 = vadd.f32 %v1378, %v1589
          %v1663 = vadd.f32 %v1379, %v1592
          %v1664 = vadd.f32 %v1380, %v1595
          %v1665 = vadd.f32 %v1381, %v1598
          %v1666 = vadd.f32 %v1382, %v1601
          %v1667 = vadd.f32 %v1383, %v1604
          %v1668 = vadd.f32 %v1384, %v1607
          %v1669 = vadd.f32 %v1385, %v1610
          %v1670 = vadd.f32 %v1386, %v1613
          %v1671 = vadd.f32 %v1387, %v1616
          %v1672 = vadd.f32 %v1388, %v1619
          %v1673 = vadd.f32 %v1389, %v1622
          %v1674 = vadd.f32 %v1390, %v1625
          %v1675 = vadd.f32 %v1391, %v1628
          %v1676 = vadd.f32 %v1392, %v1631
          %v1677 = vadd.f32 %v1393, %v1634
          %v1678 = vadd.f32 %v1394, %v1637
          %v1679 = vadd.f32 %v1395, %v1640
          %v1680 = vadd.f32 %v1396, %v1643
          %v1681 = vadd.f32 %v1397, %v1646
          %v1682 = vadd.f32 %v1398, %v1649
          %v1683 = vld [vmem:[%s610 + $0x4] sm:$0xff]
          %v1684 = vld [vmem:[%s610 + $0xc] sm:$0xff]
          %v1685 = vld [vmem:[%s610 + $0x1c] sm:$0xff]
          %v1686 = vld [vmem:[%s610 + $0x24] sm:$0xff]
          %v1687 = vld [vmem:[%s610 + $0x34] sm:$0xff]
          %v1688 = vld [vmem:[%s610 + $0x3c] sm:$0xff]
          %v1689 = vld [vmem:[%s610 + $0x4c] sm:$0xff]
          %v1690 = vld [vmem:[%s610 + $0x54] sm:$0xff]
          %v1691 = vld [vmem:[%s610 + $0x64] sm:$0xff]
          %v1692 = vld [vmem:[%s610 + $0x6c] sm:$0xff]
          %v1693 = vld [vmem:[%s610 + $0x7c] sm:$0xff]
          %v1694 = vld [vmem:[%s610 + $0x84] sm:$0xff]
          %v1695 = vld [vmem:[%s610 + $0x94] sm:$0xff]
          %v1696 = vld [vmem:[%s610 + $0x9c] sm:$0xff]
          %v1697 = vld [vmem:[%s610 + $0xac] sm:$0xff]
          %v1698 = vld [vmem:[%s610 + $0xb4] sm:$0xff]
          %v1699 = vld [vmem:[%s610 + $0xc4] sm:$0xff]
          %v1700 = vld [vmem:[%s610 + $0xcc] sm:$0xff]
          %v1701 = vld [vmem:[%s610 + $0xdc] sm:$0xff]
          %v1702 = vld [vmem:[%s610 + $0xe4] sm:$0xff]
          %v1703 = vld [vmem:[%s610 + $0xf4] sm:$0xff]
          %v1704 = vld [vmem:[%s610 + $0xfc] sm:$0xff]
          %v1705 = vld [vmem:[%s610 + $0x10c] sm:$0xff]
          %v1706 = vld [vmem:[%s610 + $0x114] sm:$0xff]
          %v1707 = vld [vmem:[%s610 + $0x124] sm:$0xff]
          %v1708 = vld [vmem:[%s610 + $0x12c] sm:$0xff]
          %v1709 = vld [vmem:[%s610 + $0x13c] sm:$0xff]
          %v1710 = vld [vmem:[%s610 + $0x144] sm:$0xff]
          %v1711 = vld [vmem:[%s610 + $0x154] sm:$0xff]
          %v1712 = vld [vmem:[%s610 + $0x15c] sm:$0xff]
          %v1713 = vld [vmem:[%s610 + $0x16c] sm:$0xff]
          %v1714 = vld [vmem:[%s610 + $0x174] sm:$0xff]
          %s1715 = sadd.s32 %s643, 4
          %s1716 = smul.u32 %s1715, 64
          %s1717 = scalar_lea.vmem %s3, %s1716
          %v1718 = vld [vmem:[%s1717] sm:$0xff]
          %v1719 = vld [vmem:[%s1717 + $0x8] sm:$0xff]
          %v1720 = vld [vmem:[%s1717 + $0x10] sm:$0xff]
          %v1721 = vld [vmem:[%s1717 + $0x18] sm:$0xff]
          %v1722 = vld [vmem:[%s1717 + $0x20] sm:$0xff]
          %v1723 = vld [vmem:[%s1717 + $0x28] sm:$0xff]
          %v1724 = vld [vmem:[%s1717 + $0x30] sm:$0xff]
          %v1725 = vld [vmem:[%s1717 + $0x38] sm:$0xff]
          %v1727 = vsel %vm223, %v1683, 0
          %v1730 = vsel %vm223, %v1684, 0
          %v1733 = vsel %vm223, %v1685, 0
          %v1736 = vsel %vm223, %v1686, 0
          %v1739 = vsel %vm223, %v1687, 0
          %v1742 = vsel %vm223, %v1688, 0
          %v1745 = vsel %vm223, %v1689, 0
          %v1748 = vsel %vm223, %v1690, 0
          %v1751 = vsel %vm223, %v1691, 0
          %v1754 = vsel %vm223, %v1692, 0
          %v1757 = vsel %vm223, %v1693, 0
          %v1760 = vsel %vm223, %v1694, 0
          %v1763 = vsel %vm223, %v1695, 0
          %v1766 = vsel %vm223, %v1696, 0
          %v1769 = vsel %vm223, %v1697, 0
          %v1772 = vsel %vm223, %v1698, 0
          %v1775 = vsel %vm223, %v1699, 0
          %v1778 = vsel %vm223, %v1700, 0
          %v1781 = vsel %vm223, %v1701, 0
          %v1784 = vsel %vm223, %v1702, 0
          %v1787 = vsel %vm223, %v1703, 0
          %v1790 = vsel %vm223, %v1704, 0
          %v1793 = vsel %vm223, %v1705, 0
          %v1796 = vsel %vm223, %v1706, 0
          %v1799 = vsel %vm223, %v1707, 0
          %v1802 = vsel %vm223, %v1708, 0
          %v1805 = vsel %vm223, %v1709, 0
          %v1808 = vsel %vm223, %v1710, 0
          %v1811 = vsel %vm223, %v1711, 0
          %v1814 = vsel %vm223, %v1712, 0
          %v1817 = vsel %vm223, %v1713, 0
          %v1820 = vsel %vm223, %v1714, 0
          %1822 = vmatpush.msra.mxu0 0.0
          %1823 = vmatpush.msra.mxu0 0.0
          %1824 = vmatpush.msra.mxu0 0.0
          %1825 = vmatpush.msra.mxu0 0.0
          %1826 = vmatpush.msra.mxu0 0.0
          %1827 = vmatpush.msra.mxu0 0.0
          %1828 = vmatpush.msra.mxu0 0.0
          %1829 = vmatpush.msra.mxu0 0.0
          %1830 = vmatpush.msra.mxu0 %v1725
          %1831 = vmatpush.msra.mxu0 %v1724
          %1832 = vmatpush.msra.mxu0 %v1723
          %1833 = vmatpush.msra.mxu0 %v1722
          %1834 = vmatpush.msra.mxu0 %v1721
          %1835 = vmatpush.msra.mxu0 %v1720
          %1836 = vmatpush.msra.mxu0 %v1719
          %1837 = vmatpush.msra.mxu0 %v1718
          %1838 = vmatmul.f32.gmra.mxu0 %v1727
          %v1839 = vpop.f32.mrf.mxu0
          %v1840 = vadd.f32 0.0, %v1839
          %1841 = vmatmul.f32.gmra.mxu0 %v1730
          %v1842 = vpop.f32.mrf.mxu0
          %v1843 = vadd.f32 0.0, %v1842
          %1844 = vmatmul.f32.gmra.mxu0 %v1733
          %v1845 = vpop.f32.mrf.mxu0
          %v1846 = vadd.f32 0.0, %v1845
          %1847 = vmatmul.f32.gmra.mxu0 %v1736
          %v1848 = vpop.f32.mrf.mxu0
          %v1849 = vadd.f32 0.0, %v1848
          %1850 = vmatmul.f32.gmra.mxu0 %v1739
          %v1851 = vpop.f32.mrf.mxu0
          %v1852 = vadd.f32 0.0, %v1851
          %1853 = vmatmul.f32.gmra.mxu0 %v1742
          %v1854 = vpop.f32.mrf.mxu0
          %v1855 = vadd.f32 0.0, %v1854
          %1856 = vmatmul.f32.gmra.mxu0 %v1745
          %v1857 = vpop.f32.mrf.mxu0
          %v1858 = vadd.f32 0.0, %v1857
          %1859 = vmatmul.f32.gmra.mxu0 %v1748
          %v1860 = vpop.f32.mrf.mxu0
          %v1861 = vadd.f32 0.0, %v1860
          %1862 = vmatmul.f32.gmra.mxu0 %v1751
          %v1863 = vpop.f32.mrf.mxu0
          %v1864 = vadd.f32 0.0, %v1863
          %1865 = vmatmul.f32.gmra.mxu0 %v1754
          %v1866 = vpop.f32.mrf.mxu0
          %v1867 = vadd.f32 0.0, %v1866
          %1868 = vmatmul.f32.gmra.mxu0 %v1757
          %v1869 = vpop.f32.mrf.mxu0
          %v1870 = vadd.f32 0.0, %v1869
          %1871 = vmatmul.f32.gmra.mxu0 %v1760
          %v1872 = vpop.f32.mrf.mxu0
          %v1873 = vadd.f32 0.0, %v1872
          %1874 = vmatmul.f32.gmra.mxu0 %v1763
          %v1875 = vpop.f32.mrf.mxu0
          %v1876 = vadd.f32 0.0, %v1875
          %1877 = vmatmul.f32.gmra.mxu0 %v1766
          %v1878 = vpop.f32.mrf.mxu0
          %v1879 = vadd.f32 0.0, %v1878
          %1880 = vmatmul.f32.gmra.mxu0 %v1769
          %v1881 = vpop.f32.mrf.mxu0
          %v1882 = vadd.f32 0.0, %v1881
          %1883 = vmatmul.f32.gmra.mxu0 %v1772
          %v1884 = vpop.f32.mrf.mxu0
          %v1885 = vadd.f32 0.0, %v1884
          %1886 = vmatmul.f32.gmra.mxu0 %v1775
          %v1887 = vpop.f32.mrf.mxu0
          %v1888 = vadd.f32 0.0, %v1887
          %1889 = vmatmul.f32.gmra.mxu0 %v1778
          %v1890 = vpop.f32.mrf.mxu0
          %v1891 = vadd.f32 0.0, %v1890
          %1892 = vmatmul.f32.gmra.mxu0 %v1781
          %v1893 = vpop.f32.mrf.mxu0
          %v1894 = vadd.f32 0.0, %v1893
          %1895 = vmatmul.f32.gmra.mxu0 %v1784
          %v1896 = vpop.f32.mrf.mxu0
          %v1897 = vadd.f32 0.0, %v1896
          %1898 = vmatmul.f32.gmra.mxu0 %v1787
          %v1899 = vpop.f32.mrf.mxu0
          %v1900 = vadd.f32 0.0, %v1899
          %1901 = vmatmul.f32.gmra.mxu0 %v1790
          %v1902 = vpop.f32.mrf.mxu0
          %v1903 = vadd.f32 0.0, %v1902
          %1904 = vmatmul.f32.gmra.mxu0 %v1793
          %v1905 = vpop.f32.mrf.mxu0
          %v1906 = vadd.f32 0.0, %v1905
          %1907 = vmatmul.f32.gmra.mxu0 %v1796
          %v1908 = vpop.f32.mrf.mxu0
          %v1909 = vadd.f32 0.0, %v1908
          %1910 = vmatmul.f32.gmra.mxu0 %v1799
          %v1911 = vpop.f32.mrf.mxu0
          %v1912 = vadd.f32 0.0, %v1911
          %1913 = vmatmul.f32.gmra.mxu0 %v1802
          %v1914 = vpop.f32.mrf.mxu0
          %v1915 = vadd.f32 0.0, %v1914
          %1916 = vmatmul.f32.gmra.mxu0 %v1805
          %v1917 = vpop.f32.mrf.mxu0
          %v1918 = vadd.f32 0.0, %v1917
          %1919 = vmatmul.f32.gmra.mxu0 %v1808
          %v1920 = vpop.f32.mrf.mxu0
          %v1921 = vadd.f32 0.0, %v1920
          %1922 = vmatmul.f32.gmra.mxu0 %v1811
          %v1923 = vpop.f32.mrf.mxu0
          %v1924 = vadd.f32 0.0, %v1923
          %1925 = vmatmul.f32.gmra.mxu0 %v1814
          %v1926 = vpop.f32.mrf.mxu0
          %v1927 = vadd.f32 0.0, %v1926
          %1928 = vmatmul.f32.gmra.mxu0 %v1817
          %v1929 = vpop.f32.mrf.mxu0
          %v1930 = vadd.f32 0.0, %v1929
          %1931 = vmatmul.f32.gmra.mxu0 %v1820
          %v1932 = vpop.f32.mrf.mxu0
          %v1933 = vadd.f32 0.0, %v1932
          %1934 = vdwg.mxu0
          %v1935 = vadd.f32 %v1651, %v1840
          %v1936 = vadd.f32 %v1652, %v1843
          %v1937 = vadd.f32 %v1653, %v1846
          %v1938 = vadd.f32 %v1654, %v1849
          %v1939 = vadd.f32 %v1655, %v1852
          %v1940 = vadd.f32 %v1656, %v1855
          %v1941 = vadd.f32 %v1657, %v1858
          %v1942 = vadd.f32 %v1658, %v1861
          %v1943 = vadd.f32 %v1659, %v1864
          %v1944 = vadd.f32 %v1660, %v1867
          %v1945 = vadd.f32 %v1661, %v1870
          %v1946 = vadd.f32 %v1662, %v1873
          %v1947 = vadd.f32 %v1663, %v1876
          %v1948 = vadd.f32 %v1664, %v1879
          %v1949 = vadd.f32 %v1665, %v1882
          %v1950 = vadd.f32 %v1666, %v1885
          %v1951 = vadd.f32 %v1667, %v1888
          %v1952 = vadd.f32 %v1668, %v1891
          %v1953 = vadd.f32 %v1669, %v1894
          %v1954 = vadd.f32 %v1670, %v1897
          %v1955 = vadd.f32 %v1671, %v1900
          %v1956 = vadd.f32 %v1672, %v1903
          %v1957 = vadd.f32 %v1673, %v1906
          %v1958 = vadd.f32 %v1674, %v1909
          %v1959 = vadd.f32 %v1675, %v1912
          %v1960 = vadd.f32 %v1676, %v1915
          %v1961 = vadd.f32 %v1677, %v1918
          %v1962 = vadd.f32 %v1678, %v1921
          %v1963 = vadd.f32 %v1679, %v1924
          %v1964 = vadd.f32 %v1680, %v1927
          %v1965 = vadd.f32 %v1681, %v1930
          %v1966 = vadd.f32 %v1682, %v1933
          %v1967 = vld [vmem:[%s610 + $0x5] sm:$0xff]
          %v1968 = vld [vmem:[%s610 + $0xd] sm:$0xff]
          %v1969 = vld [vmem:[%s610 + $0x1d] sm:$0xff]
          %v1970 = vld [vmem:[%s610 + $0x25] sm:$0xff]
          %v1971 = vld [vmem:[%s610 + $0x35] sm:$0xff]
          %v1972 = vld [vmem:[%s610 + $0x3d] sm:$0xff]
          %v1973 = vld [vmem:[%s610 + $0x4d] sm:$0xff]
          %v1974 = vld [vmem:[%s610 + $0x55] sm:$0xff]
          %v1975 = vld [vmem:[%s610 + $0x65] sm:$0xff]
          %v1976 = vld [vmem:[%s610 + $0x6d] sm:$0xff]
          %v1977 = vld [vmem:[%s610 + $0x7d] sm:$0xff]
          %v1978 = vld [vmem:[%s610 + $0x85] sm:$0xff]
          %v1979 = vld [vmem:[%s610 + $0x95] sm:$0xff]
          %v1980 = vld [vmem:[%s610 + $0x9d] sm:$0xff]
          %v1981 = vld [vmem:[%s610 + $0xad] sm:$0xff]
          %v1982 = vld [vmem:[%s610 + $0xb5] sm:$0xff]
          %v1983 = vld [vmem:[%s610 + $0xc5] sm:$0xff]
          %v1984 = vld [vmem:[%s610 + $0xcd] sm:$0xff]
          %v1985 = vld [vmem:[%s610 + $0xdd] sm:$0xff]
          %v1986 = vld [vmem:[%s610 + $0xe5] sm:$0xff]
          %v1987 = vld [vmem:[%s610 + $0xf5] sm:$0xff]
          %v1988 = vld [vmem:[%s610 + $0xfd] sm:$0xff]
          %v1989 = vld [vmem:[%s610 + $0x10d] sm:$0xff]
          %v1990 = vld [vmem:[%s610 + $0x115] sm:$0xff]
          %v1991 = vld [vmem:[%s610 + $0x125] sm:$0xff]
          %v1992 = vld [vmem:[%s610 + $0x12d] sm:$0xff]
          %v1993 = vld [vmem:[%s610 + $0x13d] sm:$0xff]
          %v1994 = vld [vmem:[%s610 + $0x145] sm:$0xff]
          %v1995 = vld [vmem:[%s610 + $0x155] sm:$0xff]
          %v1996 = vld [vmem:[%s610 + $0x15d] sm:$0xff]
          %v1997 = vld [vmem:[%s610 + $0x16d] sm:$0xff]
          %v1998 = vld [vmem:[%s610 + $0x175] sm:$0xff]
          %s1999 = sadd.s32 %s643, 5
          %s2000 = smul.u32 %s1999, 64
          %s2001 = scalar_lea.vmem %s3, %s2000
          %v2002 = vld [vmem:[%s2001] sm:$0xff]
          %v2003 = vld [vmem:[%s2001 + $0x8] sm:$0xff]
          %v2004 = vld [vmem:[%s2001 + $0x10] sm:$0xff]
          %v2005 = vld [vmem:[%s2001 + $0x18] sm:$0xff]
          %v2006 = vld [vmem:[%s2001 + $0x20] sm:$0xff]
          %v2007 = vld [vmem:[%s2001 + $0x28] sm:$0xff]
          %v2008 = vld [vmem:[%s2001 + $0x30] sm:$0xff]
          %v2009 = vld [vmem:[%s2001 + $0x38] sm:$0xff]
          %v2011 = vsel %vm223, %v1967, 0
          %v2014 = vsel %vm223, %v1968, 0
          %v2017 = vsel %vm223, %v1969, 0
          %v2020 = vsel %vm223, %v1970, 0
          %v2023 = vsel %vm223, %v1971, 0
          %v2026 = vsel %vm223, %v1972, 0
          %v2029 = vsel %vm223, %v1973, 0
          %v2032 = vsel %vm223, %v1974, 0
          %v2035 = vsel %vm223, %v1975, 0
          %v2038 = vsel %vm223, %v1976, 0
          %v2041 = vsel %vm223, %v1977, 0
          %v2044 = vsel %vm223, %v1978, 0
          %v2047 = vsel %vm223, %v1979, 0
          %v2050 = vsel %vm223, %v1980, 0
          %v2053 = vsel %vm223, %v1981, 0
          %v2056 = vsel %vm223, %v1982, 0
          %v2059 = vsel %vm223, %v1983, 0
          %v2062 = vsel %vm223, %v1984, 0
          %v2065 = vsel %vm223, %v1985, 0
          %v2068 = vsel %vm223, %v1986, 0
          %v2071 = vsel %vm223, %v1987, 0
          %v2074 = vsel %vm223, %v1988, 0
          %v2077 = vsel %vm223, %v1989, 0
          %v2080 = vsel %vm223, %v1990, 0
          %v2083 = vsel %vm223, %v1991, 0
          %v2086 = vsel %vm223, %v1992, 0
          %v2089 = vsel %vm223, %v1993, 0
          %v2092 = vsel %vm223, %v1994, 0
          %v2095 = vsel %vm223, %v1995, 0
          %v2098 = vsel %vm223, %v1996, 0
          %v2101 = vsel %vm223, %v1997, 0
          %v2104 = vsel %vm223, %v1998, 0
          %2106 = vmatpush.msra.mxu0 0.0
          %2107 = vmatpush.msra.mxu0 0.0
          %2108 = vmatpush.msra.mxu0 0.0
          %2109 = vmatpush.msra.mxu0 0.0
          %2110 = vmatpush.msra.mxu0 0.0
          %2111 = vmatpush.msra.mxu0 0.0
          %2112 = vmatpush.msra.mxu0 0.0
          %2113 = vmatpush.msra.mxu0 0.0
          %2114 = vmatpush.msra.mxu0 %v2009
          %2115 = vmatpush.msra.mxu0 %v2008
          %2116 = vmatpush.msra.mxu0 %v2007
          %2117 = vmatpush.msra.mxu0 %v2006
          %2118 = vmatpush.msra.mxu0 %v2005
          %2119 = vmatpush.msra.mxu0 %v2004
          %2120 = vmatpush.msra.mxu0 %v2003
          %2121 = vmatpush.msra.mxu0 %v2002
          %2122 = vmatmul.f32.gmra.mxu0 %v2011
          %v2123 = vpop.f32.mrf.mxu0
          %v2124 = vadd.f32 0.0, %v2123
          %2125 = vmatmul.f32.gmra.mxu0 %v2014
          %v2126 = vpop.f32.mrf.mxu0
          %v2127 = vadd.f32 0.0, %v2126
          %2128 = vmatmul.f32.gmra.mxu0 %v2017
          %v2129 = vpop.f32.mrf.mxu0
          %v2130 = vadd.f32 0.0, %v2129
          %2131 = vmatmul.f32.gmra.mxu0 %v2020
          %v2132 = vpop.f32.mrf.mxu0
          %v2133 = vadd.f32 0.0, %v2132
          %2134 = vmatmul.f32.gmra.mxu0 %v2023
          %v2135 = vpop.f32.mrf.mxu0
          %v2136 = vadd.f32 0.0, %v2135
          %2137 = vmatmul.f32.gmra.mxu0 %v2026
          %v2138 = vpop.f32.mrf.mxu0
          %v2139 = vadd.f32 0.0, %v2138
          %2140 = vmatmul.f32.gmra.mxu0 %v2029
          %v2141 = vpop.f32.mrf.mxu0
          %v2142 = vadd.f32 0.0, %v2141
          %2143 = vmatmul.f32.gmra.mxu0 %v2032
          %v2144 = vpop.f32.mrf.mxu0
          %v2145 = vadd.f32 0.0, %v2144
          %2146 = vmatmul.f32.gmra.mxu0 %v2035
          %v2147 = vpop.f32.mrf.mxu0
          %v2148 = vadd.f32 0.0, %v2147
          %2149 = vmatmul.f32.gmra.mxu0 %v2038
          %v2150 = vpop.f32.mrf.mxu0
          %v2151 = vadd.f32 0.0, %v2150
          %2152 = vmatmul.f32.gmra.mxu0 %v2041
          %v2153 = vpop.f32.mrf.mxu0
          %v2154 = vadd.f32 0.0, %v2153
          %2155 = vmatmul.f32.gmra.mxu0 %v2044
          %v2156 = vpop.f32.mrf.mxu0
          %v2157 = vadd.f32 0.0, %v2156
          %2158 = vmatmul.f32.gmra.mxu0 %v2047
          %v2159 = vpop.f32.mrf.mxu0
          %v2160 = vadd.f32 0.0, %v2159
          %2161 = vmatmul.f32.gmra.mxu0 %v2050
          %v2162 = vpop.f32.mrf.mxu0
          %v2163 = vadd.f32 0.0, %v2162
          %2164 = vmatmul.f32.gmra.mxu0 %v2053
          %v2165 = vpop.f32.mrf.mxu0
          %v2166 = vadd.f32 0.0, %v2165
          %2167 = vmatmul.f32.gmra.mxu0 %v2056
          %v2168 = vpop.f32.mrf.mxu0
          %v2169 = vadd.f32 0.0, %v2168
          %2170 = vmatmul.f32.gmra.mxu0 %v2059
          %v2171 = vpop.f32.mrf.mxu0
          %v2172 = vadd.f32 0.0, %v2171
          %2173 = vmatmul.f32.gmra.mxu0 %v2062
          %v2174 = vpop.f32.mrf.mxu0
          %v2175 = vadd.f32 0.0, %v2174
          %2176 = vmatmul.f32.gmra.mxu0 %v2065
          %v2177 = vpop.f32.mrf.mxu0
          %v2178 = vadd.f32 0.0, %v2177
          %2179 = vmatmul.f32.gmra.mxu0 %v2068
          %v2180 = vpop.f32.mrf.mxu0
          %v2181 = vadd.f32 0.0, %v2180
          %2182 = vmatmul.f32.gmra.mxu0 %v2071
          %v2183 = vpop.f32.mrf.mxu0
          %v2184 = vadd.f32 0.0, %v2183
          %2185 = vmatmul.f32.gmra.mxu0 %v2074
          %v2186 = vpop.f32.mrf.mxu0
          %v2187 = vadd.f32 0.0, %v2186
          %2188 = vmatmul.f32.gmra.mxu0 %v2077
          %v2189 = vpop.f32.mrf.mxu0
          %v2190 = vadd.f32 0.0, %v2189
          %2191 = vmatmul.f32.gmra.mxu0 %v2080
          %v2192 = vpop.f32.mrf.mxu0
          %v2193 = vadd.f32 0.0, %v2192
          %2194 = vmatmul.f32.gmra.mxu0 %v2083
          %v2195 = vpop.f32.mrf.mxu0
          %v2196 = vadd.f32 0.0, %v2195
          %2197 = vmatmul.f32.gmra.mxu0 %v2086
          %v2198 = vpop.f32.mrf.mxu0
          %v2199 = vadd.f32 0.0, %v2198
          %2200 = vmatmul.f32.gmra.mxu0 %v2089
          %v2201 = vpop.f32.mrf.mxu0
          %v2202 = vadd.f32 0.0, %v2201
          %2203 = vmatmul.f32.gmra.mxu0 %v2092
          %v2204 = vpop.f32.mrf.mxu0
          %v2205 = vadd.f32 0.0, %v2204
          %2206 = vmatmul.f32.gmra.mxu0 %v2095
          %v2207 = vpop.f32.mrf.mxu0
          %v2208 = vadd.f32 0.0, %v2207
          %2209 = vmatmul.f32.gmra.mxu0 %v2098
          %v2210 = vpop.f32.mrf.mxu0
          %v2211 = vadd.f32 0.0, %v2210
          %2212 = vmatmul.f32.gmra.mxu0 %v2101
          %v2213 = vpop.f32.mrf.mxu0
          %v2214 = vadd.f32 0.0, %v2213
          %2215 = vmatmul.f32.gmra.mxu0 %v2104
          %v2216 = vpop.f32.mrf.mxu0
          %v2217 = vadd.f32 0.0, %v2216
          %2218 = vdwg.mxu0
          %v2219 = vadd.f32 %v1935, %v2124
          %v2220 = vadd.f32 %v1936, %v2127
          %v2221 = vadd.f32 %v1937, %v2130
          %v2222 = vadd.f32 %v1938, %v2133
          %v2223 = vadd.f32 %v1939, %v2136
          %v2224 = vadd.f32 %v1940, %v2139
          %v2225 = vadd.f32 %v1941, %v2142
          %v2226 = vadd.f32 %v1942, %v2145
          %v2227 = vadd.f32 %v1943, %v2148
          %v2228 = vadd.f32 %v1944, %v2151
          %v2229 = vadd.f32 %v1945, %v2154
          %v2230 = vadd.f32 %v1946, %v2157
          %v2231 = vadd.f32 %v1947, %v2160
          %v2232 = vadd.f32 %v1948, %v2163
          %v2233 = vadd.f32 %v1949, %v2166
          %v2234 = vadd.f32 %v1950, %v2169
          %v2235 = vadd.f32 %v1951, %v2172
          %v2236 = vadd.f32 %v1952, %v2175
          %v2237 = vadd.f32 %v1953, %v2178
          %v2238 = vadd.f32 %v1954, %v2181
          %v2239 = vadd.f32 %v1955, %v2184
          %v2240 = vadd.f32 %v1956, %v2187
          %v2241 = vadd.f32 %v1957, %v2190
          %v2242 = vadd.f32 %v1958, %v2193
          %v2243 = vadd.f32 %v1959, %v2196
          %v2244 = vadd.f32 %v1960, %v2199
          %v2245 = vadd.f32 %v1961, %v2202
          %v2246 = vadd.f32 %v1962, %v2205
          %v2247 = vadd.f32 %v1963, %v2208
          %v2248 = vadd.f32 %v1964, %v2211
          %v2249 = vadd.f32 %v1965, %v2214
          %v2250 = vadd.f32 %v1966, %v2217
          %v2251 = vld [vmem:[%s610 + $0x6] sm:$0xff]
          %v2252 = vld [vmem:[%s610 + $0xe] sm:$0xff]
          %v2253 = vld [vmem:[%s610 + $0x1e] sm:$0xff]
          %v2254 = vld [vmem:[%s610 + $0x26] sm:$0xff]
          %v2255 = vld [vmem:[%s610 + $0x36] sm:$0xff]
          %v2256 = vld [vmem:[%s610 + $0x3e] sm:$0xff]
          %v2257 = vld [vmem:[%s610 + $0x4e] sm:$0xff]
          %v2258 = vld [vmem:[%s610 + $0x56] sm:$0xff]
          %v2259 = vld [vmem:[%s610 + $0x66] sm:$0xff]
          %v2260 = vld [vmem:[%s610 + $0x6e] sm:$0xff]
          %v2261 = vld [vmem:[%s610 + $0x7e] sm:$0xff]
          %v2262 = vld [vmem:[%s610 + $0x86] sm:$0xff]
          %v2263 = vld [vmem:[%s610 + $0x96] sm:$0xff]
          %v2264 = vld [vmem:[%s610 + $0x9e] sm:$0xff]
          %v2265 = vld [vmem:[%s610 + $0xae] sm:$0xff]
          %v2266 = vld [vmem:[%s610 + $0xb6] sm:$0xff]
          %v2267 = vld [vmem:[%s610 + $0xc6] sm:$0xff]
          %v2268 = vld [vmem:[%s610 + $0xce] sm:$0xff]
          %v2269 = vld [vmem:[%s610 + $0xde] sm:$0xff]
          %v2270 = vld [vmem:[%s610 + $0xe6] sm:$0xff]
          %v2271 = vld [vmem:[%s610 + $0xf6] sm:$0xff]
          %v2272 = vld [vmem:[%s610 + $0xfe] sm:$0xff]
          %v2273 = vld [vmem:[%s610 + $0x10e] sm:$0xff]
          %v2274 = vld [vmem:[%s610 + $0x116] sm:$0xff]
          %v2275 = vld [vmem:[%s610 + $0x126] sm:$0xff]
          %v2276 = vld [vmem:[%s610 + $0x12e] sm:$0xff]
          %v2277 = vld [vmem:[%s610 + $0x13e] sm:$0xff]
          %v2278 = vld [vmem:[%s610 + $0x146] sm:$0xff]
          %v2279 = vld [vmem:[%s610 + $0x156] sm:$0xff]
          %v2280 = vld [vmem:[%s610 + $0x15e] sm:$0xff]
          %v2281 = vld [vmem:[%s610 + $0x16e] sm:$0xff]
          %v2282 = vld [vmem:[%s610 + $0x176] sm:$0xff]
          %s2283 = sadd.s32 %s643, 6
          %s2284 = smul.u32 %s2283, 64
          %s2285 = scalar_lea.vmem %s3, %s2284
          %v2286 = vld [vmem:[%s2285] sm:$0xff]
          %v2287 = vld [vmem:[%s2285 + $0x8] sm:$0xff]
          %v2288 = vld [vmem:[%s2285 + $0x10] sm:$0xff]
          %v2289 = vld [vmem:[%s2285 + $0x18] sm:$0xff]
          %v2290 = vld [vmem:[%s2285 + $0x20] sm:$0xff]
          %v2291 = vld [vmem:[%s2285 + $0x28] sm:$0xff]
          %v2292 = vld [vmem:[%s2285 + $0x30] sm:$0xff]
          %v2293 = vld [vmem:[%s2285 + $0x38] sm:$0xff]
          %v2295 = vsel %vm223, %v2251, 0
          %v2298 = vsel %vm223, %v2252, 0
          %v2301 = vsel %vm223, %v2253, 0
          %v2304 = vsel %vm223, %v2254, 0
          %v2307 = vsel %vm223, %v2255, 0
          %v2310 = vsel %vm223, %v2256, 0
          %v2313 = vsel %vm223, %v2257, 0
          %v2316 = vsel %vm223, %v2258, 0
          %v2319 = vsel %vm223, %v2259, 0
          %v2322 = vsel %vm223, %v2260, 0
          %v2325 = vsel %vm223, %v2261, 0
          %v2328 = vsel %vm223, %v2262, 0
          %v2331 = vsel %vm223, %v2263, 0
          %v2334 = vsel %vm223, %v2264, 0
          %v2337 = vsel %vm223, %v2265, 0
          %v2340 = vsel %vm223, %v2266, 0
          %v2343 = vsel %vm223, %v2267, 0
          %v2346 = vsel %vm223, %v2268, 0
          %v2349 = vsel %vm223, %v2269, 0
          %v2352 = vsel %vm223, %v2270, 0
          %v2355 = vsel %vm223, %v2271, 0
          %v2358 = vsel %vm223, %v2272, 0
          %v2361 = vsel %vm223, %v2273, 0
          %v2364 = vsel %vm223, %v2274, 0
          %v2367 = vsel %vm223, %v2275, 0
          %v2370 = vsel %vm223, %v2276, 0
          %v2373 = vsel %vm223, %v2277, 0
          %v2376 = vsel %vm223, %v2278, 0
          %v2379 = vsel %vm223, %v2279, 0
          %v2382 = vsel %vm223, %v2280, 0
          %v2385 = vsel %vm223, %v2281, 0
          %v2388 = vsel %vm223, %v2282, 0
          %2390 = vmatpush.msra.mxu0 0.0
          %2391 = vmatpush.msra.mxu0 0.0
          %2392 = vmatpush.msra.mxu0 0.0
          %2393 = vmatpush.msra.mxu0 0.0
          %2394 = vmatpush.msra.mxu0 0.0
          %2395 = vmatpush.msra.mxu0 0.0
          %2396 = vmatpush.msra.mxu0 0.0
          %2397 = vmatpush.msra.mxu0 0.0
          %2398 = vmatpush.msra.mxu0 %v2293
          %2399 = vmatpush.msra.mxu0 %v2292
          %2400 = vmatpush.msra.mxu0 %v2291
          %2401 = vmatpush.msra.mxu0 %v2290
          %2402 = vmatpush.msra.mxu0 %v2289
          %2403 = vmatpush.msra.mxu0 %v2288
          %2404 = vmatpush.msra.mxu0 %v2287
          %2405 = vmatpush.msra.mxu0 %v2286
          %2406 = vmatmul.f32.gmra.mxu0 %v2295
          %v2407 = vpop.f32.mrf.mxu0
          %v2408 = vadd.f32 0.0, %v2407
          %2409 = vmatmul.f32.gmra.mxu0 %v2298
          %v2410 = vpop.f32.mrf.mxu0
          %v2411 = vadd.f32 0.0, %v2410
          %2412 = vmatmul.f32.gmra.mxu0 %v2301
          %v2413 = vpop.f32.mrf.mxu0
          %v2414 = vadd.f32 0.0, %v2413
          %2415 = vmatmul.f32.gmra.mxu0 %v2304
          %v2416 = vpop.f32.mrf.mxu0
          %v2417 = vadd.f32 0.0, %v2416
          %2418 = vmatmul.f32.gmra.mxu0 %v2307
          %v2419 = vpop.f32.mrf.mxu0
          %v2420 = vadd.f32 0.0, %v2419
          %2421 = vmatmul.f32.gmra.mxu0 %v2310
          %v2422 = vpop.f32.mrf.mxu0
          %v2423 = vadd.f32 0.0, %v2422
          %2424 = vmatmul.f32.gmra.mxu0 %v2313
          %v2425 = vpop.f32.mrf.mxu0
          %v2426 = vadd.f32 0.0, %v2425
          %2427 = vmatmul.f32.gmra.mxu0 %v2316
          %v2428 = vpop.f32.mrf.mxu0
          %v2429 = vadd.f32 0.0, %v2428
          %2430 = vmatmul.f32.gmra.mxu0 %v2319
          %v2431 = vpop.f32.mrf.mxu0
          %v2432 = vadd.f32 0.0, %v2431
          %2433 = vmatmul.f32.gmra.mxu0 %v2322
          %v2434 = vpop.f32.mrf.mxu0
          %v2435 = vadd.f32 0.0, %v2434
          %2436 = vmatmul.f32.gmra.mxu0 %v2325
          %v2437 = vpop.f32.mrf.mxu0
          %v2438 = vadd.f32 0.0, %v2437
          %2439 = vmatmul.f32.gmra.mxu0 %v2328
          %v2440 = vpop.f32.mrf.mxu0
          %v2441 = vadd.f32 0.0, %v2440
          %2442 = vmatmul.f32.gmra.mxu0 %v2331
          %v2443 = vpop.f32.mrf.mxu0
          %v2444 = vadd.f32 0.0, %v2443
          %2445 = vmatmul.f32.gmra.mxu0 %v2334
          %v2446 = vpop.f32.mrf.mxu0
          %v2447 = vadd.f32 0.0, %v2446
          %2448 = vmatmul.f32.gmra.mxu0 %v2337
          %v2449 = vpop.f32.mrf.mxu0
          %v2450 = vadd.f32 0.0, %v2449
          %2451 = vmatmul.f32.gmra.mxu0 %v2340
          %v2452 = vpop.f32.mrf.mxu0
          %v2453 = vadd.f32 0.0, %v2452
          %2454 = vmatmul.f32.gmra.mxu0 %v2343
          %v2455 = vpop.f32.mrf.mxu0
          %v2456 = vadd.f32 0.0, %v2455
          %2457 = vmatmul.f32.gmra.mxu0 %v2346
          %v2458 = vpop.f32.mrf.mxu0
          %v2459 = vadd.f32 0.0, %v2458
          %2460 = vmatmul.f32.gmra.mxu0 %v2349
          %v2461 = vpop.f32.mrf.mxu0
          %v2462 = vadd.f32 0.0, %v2461
          %2463 = vmatmul.f32.gmra.mxu0 %v2352
          %v2464 = vpop.f32.mrf.mxu0
          %v2465 = vadd.f32 0.0, %v2464
          %2466 = vmatmul.f32.gmra.mxu0 %v2355
          %v2467 = vpop.f32.mrf.mxu0
          %v2468 = vadd.f32 0.0, %v2467
          %2469 = vmatmul.f32.gmra.mxu0 %v2358
          %v2470 = vpop.f32.mrf.mxu0
          %v2471 = vadd.f32 0.0, %v2470
          %2472 = vmatmul.f32.gmra.mxu0 %v2361
          %v2473 = vpop.f32.mrf.mxu0
          %v2474 = vadd.f32 0.0, %v2473
          %2475 = vmatmul.f32.gmra.mxu0 %v2364
          %v2476 = vpop.f32.mrf.mxu0
          %v2477 = vadd.f32 0.0, %v2476
          %2478 = vmatmul.f32.gmra.mxu0 %v2367
          %v2479 = vpop.f32.mrf.mxu0
          %v2480 = vadd.f32 0.0, %v2479
          %2481 = vmatmul.f32.gmra.mxu0 %v2370
          %v2482 = vpop.f32.mrf.mxu0
          %v2483 = vadd.f32 0.0, %v2482
          %2484 = vmatmul.f32.gmra.mxu0 %v2373
          %v2485 = vpop.f32.mrf.mxu0
          %v2486 = vadd.f32 0.0, %v2485
          %2487 = vmatmul.f32.gmra.mxu0 %v2376
          %v2488 = vpop.f32.mrf.mxu0
          %v2489 = vadd.f32 0.0, %v2488
          %2490 = vmatmul.f32.gmra.mxu0 %v2379
          %v2491 = vpop.f32.mrf.mxu0
          %v2492 = vadd.f32 0.0, %v2491
          %2493 = vmatmul.f32.gmra.mxu0 %v2382
          %v2494 = vpop.f32.mrf.mxu0
          %v2495 = vadd.f32 0.0, %v2494
          %2496 = vmatmul.f32.gmra.mxu0 %v2385
          %v2497 = vpop.f32.mrf.mxu0
          %v2498 = vadd.f32 0.0, %v2497
          %2499 = vmatmul.f32.gmra.mxu0 %v2388
          %v2500 = vpop.f32.mrf.mxu0
          %v2501 = vadd.f32 0.0, %v2500
          %2502 = vdwg.mxu0
          %v2503 = vadd.f32 %v2219, %v2408
          %v2504 = vadd.f32 %v2220, %v2411
          %v2505 = vadd.f32 %v2221, %v2414
          %v2506 = vadd.f32 %v2222, %v2417
          %v2507 = vadd.f32 %v2223, %v2420
          %v2508 = vadd.f32 %v2224, %v2423
          %v2509 = vadd.f32 %v2225, %v2426
          %v2510 = vadd.f32 %v2226, %v2429
          %v2511 = vadd.f32 %v2227, %v2432
          %v2512 = vadd.f32 %v2228, %v2435
          %v2513 = vadd.f32 %v2229, %v2438
          %v2514 = vadd.f32 %v2230, %v2441
          %v2515 = vadd.f32 %v2231, %v2444
          %v2516 = vadd.f32 %v2232, %v2447
          %v2517 = vadd.f32 %v2233, %v2450
          %v2518 = vadd.f32 %v2234, %v2453
          %v2519 = vadd.f32 %v2235, %v2456
          %v2520 = vadd.f32 %v2236, %v2459
          %v2521 = vadd.f32 %v2237, %v2462
          %v2522 = vadd.f32 %v2238, %v2465
          %v2523 = vadd.f32 %v2239, %v2468
          %v2524 = vadd.f32 %v2240, %v2471
          %v2525 = vadd.f32 %v2241, %v2474
          %v2526 = vadd.f32 %v2242, %v2477
          %v2527 = vadd.f32 %v2243, %v2480
          %v2528 = vadd.f32 %v2244, %v2483
          %v2529 = vadd.f32 %v2245, %v2486
          %v2530 = vadd.f32 %v2246, %v2489
          %v2531 = vadd.f32 %v2247, %v2492
          %v2532 = vadd.f32 %v2248, %v2495
          %v2533 = vadd.f32 %v2249, %v2498
          %v2534 = vadd.f32 %v2250, %v2501
          %v2535 = vld [vmem:[#allocation3] sm:$0xff]
          %v2536 = vld [vmem:[#allocation3 + $0x8] sm:$0xff]
          %v2537 = vld [vmem:[#allocation3 + $0x10] sm:$0xff]
          %v2538 = vld [vmem:[#allocation3 + $0x18] sm:$0xff]
          %v2539 = vld [vmem:[#allocation3 + $0x20] sm:$0xff]
          %v2540 = vld [vmem:[#allocation3 + $0x28] sm:$0xff]
          %v2541 = vld [vmem:[#allocation3 + $0x30] sm:$0xff]
          %v2542 = vld [vmem:[#allocation3 + $0x38] sm:$0xff]
          %v2543 = vld [vmem:[#allocation3 + $0x40] sm:$0xff]
          %v2544 = vld [vmem:[#allocation3 + $0x48] sm:$0xff]
          %v2545 = vld [vmem:[#allocation3 + $0x50] sm:$0xff]
          %v2546 = vld [vmem:[#allocation3 + $0x58] sm:$0xff]
          %v2547 = vld [vmem:[#allocation3 + $0x60] sm:$0xff]
          %v2548 = vld [vmem:[#allocation3 + $0x68] sm:$0xff]
          %v2549 = vld [vmem:[#allocation3 + $0x70] sm:$0xff]
          %v2550 = vld [vmem:[#allocation3 + $0x78] sm:$0xff]
          %v2551 = vld [vmem:[#allocation3 + $0x80] sm:$0xff]
          %v2552 = vld [vmem:[#allocation3 + $0x88] sm:$0xff]
          %v2553 = vld [vmem:[#allocation3 + $0x90] sm:$0xff]
          %v2554 = vld [vmem:[#allocation3 + $0x98] sm:$0xff]
          %v2555 = vld [vmem:[#allocation3 + $0xa0] sm:$0xff]
          %v2556 = vld [vmem:[#allocation3 + $0xa8] sm:$0xff]
          %v2557 = vld [vmem:[#allocation3 + $0xb0] sm:$0xff]
          %v2558 = vld [vmem:[#allocation3 + $0xb8] sm:$0xff]
          %v2559 = vld [vmem:[#allocation3 + $0xc0] sm:$0xff]
          %v2560 = vld [vmem:[#allocation3 + $0xc8] sm:$0xff]
          %v2561 = vld [vmem:[#allocation3 + $0xd0] sm:$0xff]
          %v2562 = vld [vmem:[#allocation3 + $0xd8] sm:$0xff]
          %v2563 = vld [vmem:[#allocation3 + $0xe0] sm:$0xff]
          %v2564 = vld [vmem:[#allocation3 + $0xe8] sm:$0xff]
          %v2565 = vld [vmem:[#allocation3 + $0xf0] sm:$0xff]
          %v2566 = vld [vmem:[#allocation3 + $0xf8] sm:$0xff]
          %v2567 = vadd.f32 %v2535, %v2503
          %v2568 = vadd.f32 %v2536, %v2504
          %v2569 = vadd.f32 %v2537, %v2505
          %v2570 = vadd.f32 %v2538, %v2506
          %v2571 = vadd.f32 %v2539, %v2507
          %v2572 = vadd.f32 %v2540, %v2508
          %v2573 = vadd.f32 %v2541, %v2509
          %v2574 = vadd.f32 %v2542, %v2510
          %v2575 = vadd.f32 %v2543, %v2511
          %v2576 = vadd.f32 %v2544, %v2512
          %v2577 = vadd.f32 %v2545, %v2513
          %v2578 = vadd.f32 %v2546, %v2514
          %v2579 = vadd.f32 %v2547, %v2515
          %v2580 = vadd.f32 %v2548, %v2516
          %v2581 = vadd.f32 %v2549, %v2517
          %v2582 = vadd.f32 %v2550, %v2518
          %v2583 = vadd.f32 %v2551, %v2519
          %v2584 = vadd.f32 %v2552, %v2520
          %v2585 = vadd.f32 %v2553, %v2521
          %v2586 = vadd.f32 %v2554, %v2522
          %v2587 = vadd.f32 %v2555, %v2523
          %v2588 = vadd.f32 %v2556, %v2524
          %v2589 = vadd.f32 %v2557, %v2525
          %v2590 = vadd.f32 %v2558, %v2526
          %v2591 = vadd.f32 %v2559, %v2527
          %v2592 = vadd.f32 %v2560, %v2528
          %v2593 = vadd.f32 %v2561, %v2529
          %v2594 = vadd.f32 %v2562, %v2530
          %v2595 = vadd.f32 %v2563, %v2531
          %v2596 = vadd.f32 %v2564, %v2532
          %v2597 = vadd.f32 %v2565, %v2533
          %v2598 = vadd.f32 %v2566, %v2534
          %2599 = vst.msk [vmem:[#allocation3] sm:$0xff] %vm223, %v2567
          %2600 = vst.msk [vmem:[#allocation3 + $0x8] sm:$0xff] %vm223, %v2568
          %2601 = vst.msk [vmem:[#allocation3 + $0x10] sm:$0xff] %vm223, %v2569
          %2602 = vst.msk [vmem:[#allocation3 + $0x18] sm:$0xff] %vm223, %v2570
          %2603 = vst.msk [vmem:[#allocation3 + $0x20] sm:$0xff] %vm223, %v2571
          %2604 = vst.msk [vmem:[#allocation3 + $0x28] sm:$0xff] %vm223, %v2572
          %2605 = vst.msk [vmem:[#allocation3 + $0x30] sm:$0xff] %vm223, %v2573
          %2606 = vst.msk [vmem:[#allocation3 + $0x38] sm:$0xff] %vm223, %v2574
          %2607 = vst.msk [vmem:[#allocation3 + $0x40] sm:$0xff] %vm223, %v2575
          %2608 = vst.msk [vmem:[#allocation3 + $0x48] sm:$0xff] %vm223, %v2576
          %2609 = vst.msk [vmem:[#allocation3 + $0x50] sm:$0xff] %vm223, %v2577
          %2610 = vst.msk [vmem:[#allocation3 + $0x58] sm:$0xff] %vm223, %v2578
          %2611 = vst.msk [vmem:[#allocation3 + $0x60] sm:$0xff] %vm223, %v2579
          %2612 = vst.msk [vmem:[#allocation3 + $0x68] sm:$0xff] %vm223, %v2580
          %2613 = vst.msk [vmem:[#allocation3 + $0x70] sm:$0xff] %vm223, %v2581
          %2614 = vst.msk [vmem:[#allocation3 + $0x78] sm:$0xff] %vm223, %v2582
          %2615 = vst.msk [vmem:[#allocation3 + $0x80] sm:$0xff] %vm223, %v2583
          %2616 = vst.msk [vmem:[#allocation3 + $0x88] sm:$0xff] %vm223, %v2584
          %2617 = vst.msk [vmem:[#allocation3 + $0x90] sm:$0xff] %vm223, %v2585
          %2618 = vst.msk [vmem:[#allocation3 + $0x98] sm:$0xff] %vm223, %v2586
          %2619 = vst.msk [vmem:[#allocation3 + $0xa0] sm:$0xff] %vm223, %v2587
          %2620 = vst.msk [vmem:[#allocation3 + $0xa8] sm:$0xff] %vm223, %v2588
          %2621 = vst.msk [vmem:[#allocation3 + $0xb0] sm:$0xff] %vm223, %v2589
          %2622 = vst.msk [vmem:[#allocation3 + $0xb8] sm:$0xff] %vm223, %v2590
          %2623 = vst.msk [vmem:[#allocation3 + $0xc0] sm:$0xff] %vm223, %v2591
          %2624 = vst.msk [vmem:[#allocation3 + $0xc8] sm:$0xff] %vm223, %v2592
          %2625 = vst.msk [vmem:[#allocation3 + $0xd0] sm:$0xff] %vm223, %v2593
          %2626 = vst.msk [vmem:[#allocation3 + $0xd8] sm:$0xff] %vm223, %v2594
          %2627 = vst.msk [vmem:[#allocation3 + $0xe0] sm:$0xff] %vm223, %v2595
          %2628 = vst.msk [vmem:[#allocation3 + $0xe8] sm:$0xff] %vm223, %v2596
          %2629 = vst.msk [vmem:[#allocation3 + $0xf0] sm:$0xff] %vm223, %v2597
          %2630 = vst.msk [vmem:[#allocation3 + $0xf8] sm:$0xff] %vm223, %v2598
        $region45: #{ms_block.1} parent=39 // loop_footer
          %s608 = sadd.s32 1, %s604
        $region46: #{ms_block.1} parent=39 // loop_footer_branch
          %603 = sbr.rel target = $region42
        $region47: #{ms_block.1} parent=39 // loop_exit
          _
        %v2631 = vld [vmem:[#allocation3] sm:$0xff]
        %v2632 = vld [vmem:[#allocation3 + $0x8] sm:$0xff]
        %v2633 = vld [vmem:[#allocation3 + $0x10] sm:$0xff]
        %v2634 = vld [vmem:[#allocation3 + $0x18] sm:$0xff]
        %v2635 = vld [vmem:[#allocation3 + $0x20] sm:$0xff]
        %v2636 = vld [vmem:[#allocation3 + $0x28] sm:$0xff]
        %v2637 = vld [vmem:[#allocation3 + $0x30] sm:$0xff]
        %v2638 = vld [vmem:[#allocation3 + $0x38] sm:$0xff]
        %v2639 = vld [vmem:[#allocation3 + $0x40] sm:$0xff]
        %v2640 = vld [vmem:[#allocation3 + $0x48] sm:$0xff]
        %v2641 = vld [vmem:[#allocation3 + $0x50] sm:$0xff]
        %v2642 = vld [vmem:[#allocation3 + $0x58] sm:$0xff]
        %v2643 = vld [vmem:[#allocation3 + $0x60] sm:$0xff]
        %v2644 = vld [vmem:[#allocation3 + $0x68] sm:$0xff]
        %v2645 = vld [vmem:[#allocation3 + $0x70] sm:$0xff]
        %v2646 = vld [vmem:[#allocation3 + $0x78] sm:$0xff]
        %v2647 = vld [vmem:[#allocation3 + $0x80] sm:$0xff]
        %v2648 = vld [vmem:[#allocation3 + $0x88] sm:$0xff]
        %v2649 = vld [vmem:[#allocation3 + $0x90] sm:$0xff]
        %v2650 = vld [vmem:[#allocation3 + $0x98] sm:$0xff]
        %v2651 = vld [vmem:[#allocation3 + $0xa0] sm:$0xff]
        %v2652 = vld [vmem:[#allocation3 + $0xa8] sm:$0xff]
        %v2653 = vld [vmem:[#allocation3 + $0xb0] sm:$0xff]
        %v2654 = vld [vmem:[#allocation3 + $0xb8] sm:$0xff]
        %v2655 = vld [vmem:[#allocation3 + $0xc0] sm:$0xff]
        %v2656 = vld [vmem:[#allocation3 + $0xc8] sm:$0xff]
        %v2657 = vld [vmem:[#allocation3 + $0xd0] sm:$0xff]
        %v2658 = vld [vmem:[#allocation3 + $0xd8] sm:$0xff]
        %v2659 = vld [vmem:[#allocation3 + $0xe0] sm:$0xff]
        %v2660 = vld [vmem:[#allocation3 + $0xe8] sm:$0xff]
        %v2661 = vld [vmem:[#allocation3 + $0xf0] sm:$0xff]
        %v2662 = vld [vmem:[#allocation3 + $0xf8] sm:$0xff]
        %v2663 = vmax.f32 %v2631, 0.0
        %v2664 = vmax.f32 %v2632, 0.0
        %v2665 = vmax.f32 %v2633, 0.0
        %v2666 = vmax.f32 %v2634, 0.0
        %v2667 = vmax.f32 %v2635, 0.0
        %v2668 = vmax.f32 %v2636, 0.0
        %v2669 = vmax.f32 %v2637, 0.0
        %v2670 = vmax.f32 %v2638, 0.0
        %v2671 = vmax.f32 %v2639, 0.0
        %v2672 = vmax.f32 %v2640, 0.0
        %v2673 = vmax.f32 %v2641, 0.0
        %v2674 = vmax.f32 %v2642, 0.0
        %v2675 = vmax.f32 %v2643, 0.0
        %v2676 = vmax.f32 %v2644, 0.0
        %v2677 = vmax.f32 %v2645, 0.0
        %v2678 = vmax.f32 %v2646, 0.0
        %v2679 = vmax.f32 %v2647, 0.0
        %v2680 = vmax.f32 %v2648, 0.0
        %v2681 = vmax.f32 %v2649, 0.0
        %v2682 = vmax.f32 %v2650, 0.0
        %v2683 = vmax.f32 %v2651, 0.0
        %v2684 = vmax.f32 %v2652, 0.0
        %v2685 = vmax.f32 %v2653, 0.0
        %v2686 = vmax.f32 %v2654, 0.0
        %v2687 = vmax.f32 %v2655, 0.0
        %v2688 = vmax.f32 %v2656, 0.0
        %v2689 = vmax.f32 %v2657, 0.0
        %v2690 = vmax.f32 %v2658, 0.0
        %v2691 = vmax.f32 %v2659, 0.0
        %v2692 = vmax.f32 %v2660, 0.0
        %v2693 = vmax.f32 %v2661, 0.0
        %v2694 = vmax.f32 %v2662, 0.0
        %2695 = vst.msk [vmem:[%s217] sm:$0xff] %vm223, %v2663
        %2696 = vst.msk [vmem:[%s217 + $0x8] sm:$0xff] %vm223, %v2664
        %2697 = vst.msk [vmem:[%s217 + $0x10] sm:$0xff] %vm223, %v2665
        %2698 = vst.msk [vmem:[%s217 + $0x18] sm:$0xff] %vm223, %v2666
        %2699 = vst.msk [vmem:[%s217 + $0x20] sm:$0xff] %vm223, %v2667
        %2700 = vst.msk [vmem:[%s217 + $0x28] sm:$0xff] %vm223, %v2668
        %2701 = vst.msk [vmem:[%s217 + $0x30] sm:$0xff] %vm223, %v2669
        %2702 = vst.msk [vmem:[%s217 + $0x38] sm:$0xff] %vm223, %v2670
        %2703 = vst.msk [vmem:[%s217 + $0x40] sm:$0xff] %vm223, %v2671
        %2704 = vst.msk [vmem:[%s217 + $0x48] sm:$0xff] %vm223, %v2672
        %2705 = vst.msk [vmem:[%s217 + $0x50] sm:$0xff] %vm223, %v2673
        %2706 = vst.msk [vmem:[%s217 + $0x58] sm:$0xff] %vm223, %v2674
        %2707 = vst.msk [vmem:[%s217 + $0x60] sm:$0xff] %vm223, %v2675
        %2708 = vst.msk [vmem:[%s217 + $0x68] sm:$0xff] %vm223, %v2676
        %2709 = vst.msk [vmem:[%s217 + $0x70] sm:$0xff] %vm223, %v2677
        %2710 = vst.msk [vmem:[%s217 + $0x78] sm:$0xff] %vm223, %v2678
        %2711 = vst.msk [vmem:[%s217 + $0x80] sm:$0xff] %vm223, %v2679
        %2712 = vst.msk [vmem:[%s217 + $0x88] sm:$0xff] %vm223, %v2680
        %2713 = vst.msk [vmem:[%s217 + $0x90] sm:$0xff] %vm223, %v2681
        %2714 = vst.msk [vmem:[%s217 + $0x98] sm:$0xff] %vm223, %v2682
        %2715 = vst.msk [vmem:[%s217 + $0xa0] sm:$0xff] %vm223, %v2683
        %2716 = vst.msk [vmem:[%s217 + $0xa8] sm:$0xff] %vm223, %v2684
        %2717 = vst.msk [vmem:[%s217 + $0xb0] sm:$0xff] %vm223, %v2685
        %2718 = vst.msk [vmem:[%s217 + $0xb8] sm:$0xff] %vm223, %v2686
        %2719 = vst.msk [vmem:[%s217 + $0xc0] sm:$0xff] %vm223, %v2687
        %2720 = vst.msk [vmem:[%s217 + $0xc8] sm:$0xff] %vm223, %v2688
        %2721 = vst.msk [vmem:[%s217 + $0xd0] sm:$0xff] %vm223, %v2689
        %2722 = vst.msk [vmem:[%s217 + $0xd8] sm:$0xff] %vm223, %v2690
        %2723 = vst.msk [vmem:[%s217 + $0xe0] sm:$0xff] %vm223, %v2691
        %2724 = vst.msk [vmem:[%s217 + $0xe8] sm:$0xff] %vm223, %v2692
        %2725 = vst.msk [vmem:[%s217 + $0xf0] sm:$0xff] %vm223, %v2693
        %2726 = vst.msk [vmem:[%s217 + $0xf8] sm:$0xff] %vm223, %v2694
        %s2727 = sand.u32 %s137, 1
        %s2728 = scalar_lea.sflag [#allocation5], %s2727
        %s2729 = sand.u32 %s137, 1
        %s2730 = smul.addr %s2729, 256
        %s2731 = scalar_lea.vmem [#allocation4], %s2730
        // Predicated region
        $region48: #{ms_block.1} parent=39 // pred_check
          %p2732 = pneg %p147
        $region49: #{ms_block.1} parent=39 // pred_check_branch
          %2734 = sbr.rel (%p2732) target = $region51
        $region50: #{ms_block.1} parent=39 // pred_region
          %2736 = vsyncadd %s2728, 0
          %s2737 = smul.addr %s19, 32
          %s2738 = smul.addr %s2737, 8
          %s2739 = scalar_lea.hbm %s5, %s2738
          %s2740 = sshll.u32 %s2731, 4
          %s2741 = int_to_ptr.vmem [resolvable:$true] %s2740
          %s2742 = sshll.u32 %s2739, 4
          %s2743 = int_to_ptr.hbm [resolvable:$true] %s2742
          %2748 = dma.vmem_to_hbm [thread:$0]  %s2741, 4096, %s2743, %s2728, 128, 128, 8
        $region51: #{ms_block.1} parent=39 // pred_fallthru
          _
      $region40: #{ms_block.1} parent=5 // pred_fallthru
        _
      %p2749 = scmp.le.s32.totalorder 2, %s14
      // Predicated region
      $region52: #{ms_block.1} parent=5 // pred_check
        %p2750 = pneg %p2749
      $region53: #{ms_block.1} parent=5 // pred_check_branch
        %2752 = sbr.rel (%p2750) target = $region55
      $region54: #{ms_block.1} parent=5 // pred_region
        %s2753 = ssub.s32 %s14, 2
        // Predicated region
        $region56: #{ms_block.1} parent=54 // pred_check
          %p2754 = pneg %p153
        $region57: #{ms_block.1} parent=54 // pred_check_branch
          %2756 = sbr.rel (%p2754) target = $region59
        $region58: #{ms_block.1} parent=54 // pred_region
          %s2757 = sand.u32 %s138, 1
          %s2758 = scalar_lea.sflag [#allocation5], %s2757
          %s2759 = sand.u32 %s138, 1
          %s2760 = smul.addr %s2759, 256
          %s2761 = scalar_lea.vmem [#allocation4], %s2760
          %2763 = dma.done %s2758, 4096
        $region59: #{ms_block.1} parent=54 // pred_fallthru
          _
      $region55: #{ms_block.1} parent=5 // pred_fallthru
        _
    $region6: #{ms_block.1} parent=1 // loop_footer
      %s18 = sadd.s32 1, %s14
    $region7: #{ms_block.1} parent=1 // loop_footer_branch
      %13 = sbr.rel target = $region3
    $region8: #{ms_block.1} parent=1 // loop_exit
      _
    %2764 = vsyncpa [#allocation5], 1
    %s2765 = scalar_lea.sflag [#allocation5], 1
    %2766 = vsyncpa %s2765, 1

</llo_original>
